<compile_context>
chip_gen: v7x
topology: tpu7x:2x2x1
jax: 0.10.0
libtpu: 0.0.40
codegen_flags: <defaults>
</compile_context>

<pallas_src>
import jax
import jax.numpy as jnp
from jax.experimental import pallas as pl
from jax.experimental.pallas import tpu as pltpu


def _round_up(x, m):
    return (x + m - 1) // m * m


def _cdiv(a, b):
    return -(-a // b)


def mlp_g_kernel(noise_ref, att_ref, w1n_ref, w1a_ref, b1_ref, w2_ref, b2_ref, o_ref):
    # fc1 split across the two concatenated inputs (no concat needed):
    # bf16 x bf16 MXU matmuls with f32 accumulation. Inputs are already bf16.
    # TODO(synk): on v6e/v7x, fuse the two K=128-class matmuls into one K=256
    # matmul via an in-kernel (tm, nz_p+atts_p) bf16 scratch concat if fc1 ever
    # dominates fc2 (not the case for ngh<=resSize*2 typical generator shapes).
    h = jnp.dot(noise_ref[...], w1n_ref[...], preferred_element_type=jnp.float32)
    h = h + jnp.dot(att_ref[...], w1a_ref[...], preferred_element_type=jnp.float32)
    h = h + b1_ref[...]                      # (TM, ngh) + (1, ngh) broadcast, f32
    h = jnp.maximum(h, 0.2 * h)              # LeakyReLU(0.2), f32 epilogue

    # fc2 + bias + ReLU.
    o = jnp.dot(h.astype(jnp.bfloat16), w2_ref[...],
                preferred_element_type=jnp.float32)
    o = o + b2_ref[...]                      # (TM, res) + (1, res)
    o_ref[...] = jnp.maximum(o, 0.0).astype(o_ref.dtype)


def _pad2(a, rows, cols):
    return jnp.pad(a, ((0, rows - a.shape[0]), (0, cols - a.shape[1])))


def prepare_params(w1n, w1a, b1, w2, b2):
    """Pad/cast the weights ONCE (outside the per-call forward path).

    w1n: (nz, ngh) -- rows of fc1.weight.T multiplying `noise`
    w1a: (attSize, ngh) -- rows of fc1.weight.T multiplying `att`
    b1:  (ngh,), w2: (ngh, resSize), b2: (resSize,)
    Returns a dict of padded bf16 weights / padded f32 biases + dims.
    """
    nz, ngh = w1n.shape
    att_size = w1a.shape[0]
    res = w2.shape[1]

    nz_p = _round_up(nz, 128)
    atts_p = _round_up(att_size, 128)
    ngh_p = _round_up(ngh, 128)
    res_p = _round_up(res, 128)

    return dict(
        w1n=_pad2(w1n.astype(jnp.bfloat16), nz_p, ngh_p),
        w1a=_pad2(w1a.astype(jnp.bfloat16), atts_p, ngh_p),
        b1=_pad2(b1.astype(jnp.float32).reshape(1, ngh), 1, ngh_p),
        w2=_pad2(w2.astype(jnp.bfloat16), ngh_p, res_p),
        b2=_pad2(b2.astype(jnp.float32).reshape(1, res), 1, res_p),
        dims=(nz, att_size, ngh, res),
        padded_dims=(nz_p, atts_p, ngh_p, res_p),
    )


def _vmem_cap_bytes():
    try:
        cap = pltpu.get_tpu_info().vmem_capacity_bytes
        return int(0.85 * cap)
    except Exception:
        return 64 << 20  # conservative default (full v7x per-TC VMEM)


def mlp_g_forward(noise, att, params):
    """Fused MLP_g.forward.

    noise: (B, nz) f32, att: (B, attSize) f32.
    params: output of prepare_params() (pre-padded bf16 weights / f32 biases).
    Returns (B, resSize) f32.
    """
    B = noise.shape[0]
    nz, att_size, ngh, res = params["dims"]
    nz_p, atts_p, ngh_p, res_p = params["padded_dims"]
    assert noise.shape[1] == nz and att.shape[1] == att_size

    # Batch tile: minimize padding waste while keeping tiles <= 256 (full MXU on
    # v6e/v7x) and a multiple of 16 (bf16 sublane packing of the cast LHS).
    n_tiles = max(1, _cdiv(B, 256))
    tm = min(256, _round_up(_cdiv(B, n_tiles), 16))
    b_pad = _round_up(B, tm)
    grid = (b_pad // tm,)

    # Activations: pad batch + lane dims and cast to bf16 in the wrapper (halves
    # per-tile DMA + VMEM vs. f32, removes the in-kernel cast).
    noise_pad = _pad2(noise, b_pad, nz_p).astype(jnp.bfloat16)
    att_pad = _pad2(att, b_pad, atts_p).astype(jnp.bfloat16)

    # VMEM budget: single-buffered bf16 weights + f32 biases (constant index_maps,
    # Buffered(1)), double-buffered bf16 activation tiles and f32 output tiles,
    # plus the f32 hidden intermediate, with ~50% slack.
    w_bytes = ((nz_p + atts_p) * ngh_p + ngh_p * res_p) * 2
    b_bytes = (ngh_p + res_p) * 4
    act_bytes = 2 * tm * (nz_p + atts_p) * 2
    out_bytes = 2 * tm * res_p * 4
    h_bytes = tm * ngh_p * 4
    vmem_limit = int(1.5 * (w_bytes + b_bytes + act_bytes + out_bytes + h_bytes)) + (2 << 20)
    vmem_limit = min(max(vmem_limit, 16 << 20), _vmem_cap_bytes())
    # TODO(synk): for very large ngh/res (e.g. 4096/2048 near v7x's 64 MiB VMEM),
    # add a second grid axis over `res` with w2 tiled (ngh, TN) instead of resident.

    # Tiny grids: megacore sharding would duplicate the resident-weight DMA per
    # core with almost no parallel gain -> keep sequential. Otherwise parallel.
    semantics = ("arbitrary",) if grid[0] <= 2 else ("parallel",)

    resident = dict(pipeline_mode=pl.Buffered(buffer_count=1))

    out = pl.pallas_call(
        mlp_g_kernel,
        out_shape=jax.ShapeDtypeStruct((b_pad, res_p), jnp.float32),
        grid=grid,
        in_specs=[
            pl.BlockSpec((tm, nz_p), lambda i: (i, 0)),                   # noise tile (pipelined)
            pl.BlockSpec((tm, atts_p), lambda i: (i, 0)),                 # att tile (pipelined)
            pl.BlockSpec((nz_p, ngh_p), lambda i: (0, 0), **resident),    # W1 (noise rows)
            pl.BlockSpec((atts_p, ngh_p), lambda i: (0, 0), **resident),  # W1 (att rows)
            pl.BlockSpec((1, ngh_p), lambda i: (0, 0), **resident),       # b1
            pl.BlockSpec((ngh_p, res_p), lambda i: (0, 0), **resident),   # W2
            pl.BlockSpec((1, res_p), lambda i: (0, 0), **resident),       # b2
        ],
        out_specs=pl.BlockSpec((tm, res_p), lambda i: (i, 0)),
        compiler_params=pltpu.CompilerParams(
            dimension_semantics=semantics,
            vmem_limit_bytes=vmem_limit,
        ),
    )(noise_pad, att_pad, params["w1n"], params["w1a"], params["b1"],
      params["w2"], params["b2"])

    return out[:B, :res]


def init_params(key, att_size, nz, ngh, res_size):
    """weights_init semantics: Linear weight ~ N(0, 0.02), bias = 0.
    fc1.weight.T is stored pre-transposed and split into (nz, ngh) / (attSize, ngh)
    halves matching the cat([noise, att]) ordering."""
    k1, k2 = jax.random.split(key, 2)
    w1 = 0.02 * jax.random.normal(k1, (nz + att_size, ngh), jnp.float32)
    w1n = w1[:nz]
    w1a = w1[nz:]
    b1 = jnp.zeros((ngh,), jnp.float32)
    w2 = 0.02 * jax.random.normal(k2, (ngh, res_size), jnp.float32)
    b2 = jnp.zeros((res_size,), jnp.float32)
    return w1n, w1a, b1, w2, b2


def ref_forward(noise, att, w1n, w1a, b1, w2, b2):
    """Pure-JAX reference mirroring the kernel's bf16-weight/activation,
    f32-accumulate math."""
    h = (jnp.dot(noise.astype(jnp.bfloat16), w1n.astype(jnp.bfloat16),
                 preferred_element_type=jnp.float32)
         + jnp.dot(att.astype(jnp.bfloat16), w1a.astype(jnp.bfloat16),
                   preferred_element_type=jnp.float32)
         + b1.astype(jnp.float32))
    h = jnp.maximum(h, 0.2 * h)
    o = jnp.dot(h.astype(jnp.bfloat16), w2.astype(jnp.bfloat16),
                preferred_element_type=jnp.float32) + b2
    return jnp.maximum(o, 0.0)


if __name__ == "__main__":
    # Small shapes consistent with the module (attSize/nz inputs, ngh hidden,
    # resSize out). Deliberately non-128-aligned feature dims and a
    # non-tile-aligned batch to exercise the padding path.
    B, att_size, nz, ngh, res_size = 130, 85, 75, 512, 300

    key = jax.random.PRNGKey(0)
    k_noise, k_att, k_params, k_b1, k_b2 = jax.random.split(key, 5)

    noise = jax.random.normal(k_noise, (B, nz), jnp.float32)
    att = jax.random.normal(k_att, (B, att_size), jnp.float32)
    w1n, w1a, b1, w2, b2 = init_params(k_params, att_size, nz, ngh, res_size)
    # weights_init sets biases to 0; use small random biases here so the bias
    # path is actually validated (forward semantics hold for any bias).
    b1 = 0.01 * jax.random.normal(k_b1, (ngh,), jnp.float32)
    b2 = 0.01 * jax.random.normal(k_b2, (res_size,), jnp.float32)

    # Pad/cast weights ONCE (out of the per-call forward path).
    params = prepare_params(w1n, w1a, b1, w2, b2)

    out = jax.block_until_ready(mlp_g_forward(noise, att, params))
    ref = jax.block_until_ready(ref_forward(noise, att, w1n, w1a, b1, w2, b2))

    assert out.shape == (B, res_size)
    assert out.dtype == jnp.float32
    max_err = float(jnp.max(jnp.abs(out - ref)))
    assert jnp.allclose(out, ref, atol=1e-2, rtol=1e-2), max_err

    print("KERNEL_OK")
</pallas_src>

<mosaic_0001>
module attributes {stable_mosaic.version = 11 : i64} {
  func.func @mlp_g_kernel(%arg0: i32, %arg1: memref<144x128xbf16, #tpu.memory_space<vmem>>, %arg2: memref<144x128xbf16, #tpu.memory_space<vmem>>, %arg3: memref<128x512xbf16, #tpu.memory_space<vmem>>, %arg4: memref<128x512xbf16, #tpu.memory_space<vmem>>, %arg5: memref<1x512xf32, #tpu.memory_space<vmem>>, %arg6: memref<512x384xbf16, #tpu.memory_space<vmem>>, %arg7: memref<1x384xf32, #tpu.memory_space<vmem>>, %arg8: memref<144x384xf32, #tpu.memory_space<vmem>>) attributes {dimension_semantics = [#tpu.dimension_semantics<arbitrary>], iteration_bounds = array<i64: 1>, scalar_prefetch = 0 : i64, scratch_operands = 0 : i64, tpu.core_type = #tpu.core_type<tc>, window_params = [{transform_indices = @transform_0, window_bounds = array<i64: 144, 128>}, {transform_indices = @transform_1, window_bounds = array<i64: 144, 128>}, {pipeline_mode = #tpu.pipeline_mode<synchronous>, transform_indices = @transform_2, window_bounds = array<i64: 128, 512>}, {pipeline_mode = #tpu.pipeline_mode<synchronous>, transform_indices = @transform_3, window_bounds = array<i64: 128, 512>}, {pipeline_mode = #tpu.pipeline_mode<synchronous>, transform_indices = @transform_4, window_bounds = array<i64: 1, 512>}, {pipeline_mode = #tpu.pipeline_mode<synchronous>, transform_indices = @transform_5, window_bounds = array<i64: 512, 384>}, {pipeline_mode = #tpu.pipeline_mode<synchronous>, transform_indices = @transform_6, window_bounds = array<i64: 1, 384>}, {transform_indices = @transform_7, window_bounds = array<i64: 144, 384>}]} {
    %c0 = arith.constant 0 : index
    %c0_0 = arith.constant 0 : index
    %0 = vector.load %arg1[%c0, %c0_0] : memref<144x128xbf16, #tpu.memory_space<vmem>>, vector<144x128xbf16>
    %c0_1 = arith.constant 0 : index
    %c0_2 = arith.constant 0 : index
    %1 = vector.load %arg3[%c0_1, %c0_2] : memref<128x512xbf16, #tpu.memory_space<vmem>>, vector<128x512xbf16>
    %cst = arith.constant dense<0.000000e+00> : vector<144x512xf32>
    %2 = tpu.matmul %0, %1, %cst {dimension_numbers = #tpu.dot_dimension_numbers<[1], [0], [0], [1], [0, 0, 1, 1], [], []>} : vector<144x128xbf16>, vector<128x512xbf16>, vector<144x512xf32> -> vector<144x512xf32>
    %c0_3 = arith.constant 0 : index
    %c0_4 = arith.constant 0 : index
    %3 = vector.load %arg2[%c0_3, %c0_4] : memref<144x128xbf16, #tpu.memory_space<vmem>>, vector<144x128xbf16>
    %c0_5 = arith.constant 0 : index
    %c0_6 = arith.constant 0 : index
    %4 = vector.load %arg4[%c0_5, %c0_6] : memref<128x512xbf16, #tpu.memory_space<vmem>>, vector<128x512xbf16>
    %cst_7 = arith.constant dense<0.000000e+00> : vector<144x512xf32>
    %5 = tpu.matmul %3, %4, %cst_7 {dimension_numbers = #tpu.dot_dimension_numbers<[1], [0], [0], [1], [0, 0, 1, 1], [], []>} : vector<144x128xbf16>, vector<128x512xbf16>, vector<144x512xf32> -> vector<144x512xf32>
    %6 = arith.addf %2, %5 : vector<144x512xf32>
    %c0_8 = arith.constant 0 : index
    %c0_9 = arith.constant 0 : index
    %7 = vector.load %arg5[%c0_8, %c0_9] : memref<1x512xf32, #tpu.memory_space<vmem>>, vector<1x512xf32>
    %8 = vector.broadcast %7 : vector<1x512xf32> to vector<144x512xf32>
    %9 = arith.addf %6, %8 : vector<144x512xf32>
    %cst_10 = arith.constant 2.000000e-01 : f32
    %10 = vector.broadcast %cst_10 : f32 to vector<144x512xf32>
    %11 = arith.mulf %10, %9 : vector<144x512xf32>
    %12 = arith.maximumf %9, %11 : vector<144x512xf32>
    %13 = arith.truncf %12 : vector<144x512xf32> to vector<144x512xbf16>
    %c0_11 = arith.constant 0 : index
    %c0_12 = arith.constant 0 : index
    %14 = vector.load %arg6[%c0_11, %c0_12] : memref<512x384xbf16, #tpu.memory_space<vmem>>, vector<512x384xbf16>
    %cst_13 = arith.constant dense<0.000000e+00> : vector<144x384xf32>
    %15 = tpu.matmul %13, %14, %cst_13 {dimension_numbers = #tpu.dot_dimension_numbers<[1], [0], [0], [1], [0, 0, 1, 1], [], []>} : vector<144x512xbf16>, vector<512x384xbf16>, vector<144x384xf32> -> vector<144x384xf32>
    %c0_14 = arith.constant 0 : index
    %c0_15 = arith.constant 0 : index
    %16 = vector.load %arg7[%c0_14, %c0_15] : memref<1x384xf32, #tpu.memory_space<vmem>>, vector<1x384xf32>
    %17 = vector.broadcast %16 : vector<1x384xf32> to vector<144x384xf32>
    %18 = arith.addf %15, %17 : vector<144x384xf32>
    %cst_16 = arith.constant 0.000000e+00 : f32
    %19 = vector.broadcast %cst_16 : f32 to vector<144x384xf32>
    %20 = arith.maximumf %18, %19 : vector<144x384xf32>
    %c0_17 = arith.constant 0 : index
    %c0_18 = arith.constant 0 : index
    %21 = vector.load %arg8[%c0_17, %c0_18] : memref<144x384xf32, #tpu.memory_space<vmem>>, vector<144x384xf32>
    tpu.vector_store %arg8[%c0_17, %c0_18], %20 {strides = array<i32>} : memref<144x384xf32, #tpu.memory_space<vmem>>, vector<144x384xf32>,
    return
  }
  func.func @transform_0(%arg0: i32) -> (i32, i32) {
    %c0_i32 = arith.constant 0 : i32
    %c0_i32_0 = arith.constant 0 : i32
    return %arg0, %c0_i32 : i32, i32
  }
  func.func @transform_1(%arg0: i32) -> (i32, i32) {
    %c0_i32 = arith.constant 0 : i32
    %c0_i32_0 = arith.constant 0 : i32
    return %arg0, %c0_i32 : i32, i32
  }
  func.func @transform_2(%arg0: i32) -> (i32, i32) {
    %c0_i32 = arith.constant 0 : i32
    %c0_i32_0 = arith.constant 0 : i32
    %c0_i32_1 = arith.constant 0 : i32
    return %c0_i32, %c0_i32_0 : i32, i32
  }
  func.func @transform_3(%arg0: i32) -> (i32, i32) {
    %c0_i32 = arith.constant 0 : i32
    %c0_i32_0 = arith.constant 0 : i32
    %c0_i32_1 = arith.constant 0 : i32
    return %c0_i32, %c0_i32_0 : i32, i32
  }
  func.func @transform_4(%arg0: i32) -> (i32, i32) {
    %c0_i32 = arith.constant 0 : i32
    %c0_i32_0 = arith.constant 0 : i32
    %c0_i32_1 = arith.constant 0 : i32
    return %c0_i32, %c0_i32_0 : i32, i32
  }
  func.func @transform_5(%arg0: i32) -> (i32, i32) {
    %c0_i32 = arith.constant 0 : i32
    %c0_i32_0 = arith.constant 0 : i32
    %c0_i32_1 = arith.constant 0 : i32
    return %c0_i32, %c0_i32_0 : i32, i32
  }
  func.func @transform_6(%arg0: i32) -> (i32, i32) {
    %c0_i32 = arith.constant 0 : i32
    %c0_i32_0 = arith.constant 0 : i32
    %c0_i32_1 = arith.constant 0 : i32
    return %c0_i32, %c0_i32_0 : i32, i32
  }
  func.func @transform_7(%arg0: i32) -> (i32, i32) {
    %c0_i32 = arith.constant 0 : i32
    %c0_i32_0 = arith.constant 0 : i32
    return %arg0, %c0_i32 : i32, i32
  }
}

</mosaic_0001>

<llo_original>
// kernel: tpu_custom_call.1
$region0: #{tpu_custom_call.1}
  #allocation0 [shape = 'u32[]', space=smem, size = 0x4, offset = 0x4, fixed_abs, tag = 'smem constant byte address 0x4 - core index']
  #allocation1 [shape = 'u32[144,128]{1,0:T(1,128)}', space=vmem, size = 0x12000, scoped, tag = 'internal scratch']
  %s0 = inlined_call_operand.hbm [shape: bf16[144,128], index: 0, kind: input, shape index: {}]
  %s1 = inlined_call_operand.hbm [shape: bf16[144,128], index: 1, kind: input, shape index: {}]
  %s2 = inlined_call_operand.hbm [shape: bf16[128,512], index: 2, kind: input, shape index: {}]
  %s3 = inlined_call_operand.hbm [shape: bf16[128,512], index: 3, kind: input, shape index: {}]
  %s4 = inlined_call_operand.vmem [shape: f32[1,512], index: 4, kind: input, shape index: {}]
  %s5 = inlined_call_operand.hbm [shape: bf16[512,384], index: 5, kind: input, shape index: {}]
  %s6 = inlined_call_operand.vmem [shape: f32[1,384], index: 6, kind: input, shape index: {}]
  %s7 = inlined_call_operand.hbm [shape: f32[144,384], index: 7, kind: output, shape index: {}]
  %s8 = sld [smem:[#allocation0]]
  $region58: #{tpu_custom_call.1} parent=0
    _
  %s10 = ssub.s32 1, %s8
  %s11 = scalar_select 0, %s10, %s8
  $region1: #{tpu_custom_call.1} parent=0
    #allocation2 [shape = 'u8[36864]{0}', space=vmem, size = 0x9000, scoped, tag = 'input window, operand 0, single buffered']
    #allocation3 [shape = 's32[1]{0}', space=sflag, size = 0x4, scoped, tag = 'scoped memory for tpu_custom_call.1']
    #allocation4 [shape = 's32[1]{0}', space=sflag, size = 0x4, scoped, tag = 'scoped memory for tpu_custom_call.1']
    #allocation5 [shape = 'u8[36864]{0}', space=vmem, size = 0x9000, scoped, tag = 'input window, operand 1, single buffered']
    #allocation6 [shape = 's32[1]{0}', space=sflag, size = 0x4, scoped, tag = 'scoped memory for tpu_custom_call.1']
    #allocation7 [shape = 'u8[131072]{0}', space=vmem, size = 0x20000, scoped, tag = 'input window, operand 2, single buffered']
    #allocation8 [shape = 'u8[131072]{0}', space=vmem, size = 0x20000, scoped, tag = 'input window, operand 3, single buffered']
    #allocation9 [shape = 's32[1]{0}', space=sflag, size = 0x4, scoped, tag = 'scoped memory for tpu_custom_call.1']
    #allocation10 [shape = 'u8[393216]{0}', space=vmem, size = 0x60000, scoped, tag = 'input window, operand 5, single buffered']
    #allocation11 [shape = 'u8[221184]{0}', space=vmem, size = 0x36000, scoped, tag = 'output window, operand 0, single buffered']
    %12 = vsyncpa [#allocation3], 0
    %13 = vsyncpa [#allocation6], 0
    %14 = vsyncpa [#allocation9], 0
    %15 = vsyncpa [#allocation4], 0
    // Predicated region
    $region2: #{tpu_custom_call.1} parent=1 // pred_check
      _
    $region3: #{tpu_custom_call.1} parent=1 // pred_check_branch
      %17 = sbr.rel (0) target = $region5
    $region4: #{tpu_custom_call.1} parent=1 // pred_region
      %s19 = ssub.s32 1152, 1152
      %20 = vsyncadd [#allocation3], %s19
      %s21 = sshll.u32 [#allocation2], 4
      %s22 = int_to_ptr.vmem [resolvable:$true] %s21
      %27 = dma.hbm_to_vmem [thread:$0]  %s0, 1152, %s22, [#allocation3], 64, 64, 4
    $region5: #{tpu_custom_call.1} parent=1 // pred_fallthru
      _
    // Predicated region
    $region6: #{tpu_custom_call.1} parent=1 // pred_check
      _
    $region7: #{tpu_custom_call.1} parent=1 // pred_check_branch
      %29 = sbr.rel (0) target = $region9
    $region8: #{tpu_custom_call.1} parent=1 // pred_region
      %s31 = ssub.s32 1152, 1152
      %32 = vsyncadd [#allocation6], %s31
      %s33 = sshll.u32 [#allocation5], 4
      %s34 = int_to_ptr.vmem [resolvable:$true] %s33
      %39 = dma.hbm_to_vmem [thread:$0]  %s1, 1152, %s34, [#allocation6], 64, 64, 4
    $region9: #{tpu_custom_call.1} parent=1 // pred_fallthru
      _
    // Predicated region
    $region10: #{tpu_custom_call.1} parent=1 // pred_check
      _
    $region11: #{tpu_custom_call.1} parent=1 // pred_check_branch
      %41 = sbr.rel (0) target = $region13
    $region12: #{tpu_custom_call.1} parent=1 // pred_region
      %s43 = ssub.s32 4096, 4096
      %44 = vsyncadd [#allocation6], %s43
      %s45 = sshll.u32 [#allocation7], 4
      %s46 = int_to_ptr.vmem [resolvable:$true] %s45
      %51 = dma.hbm_to_vmem [thread:$0]  %s2, 4096, %s46, [#allocation6], 256, 256, 16
    $region13: #{tpu_custom_call.1} parent=1 // pred_fallthru
      _
    // Predicated region
    $region14: #{tpu_custom_call.1} parent=1 // pred_check
      _
    $region15: #{tpu_custom_call.1} parent=1 // pred_check_branch
      %53 = sbr.rel (0) target = $region17
    $region16: #{tpu_custom_call.1} parent=1 // pred_region
      %s55 = ssub.s32 4096, 4096
      %56 = vsyncadd [#allocation9], %s55
      %s57 = sshll.u32 [#allocation8], 4
      %s58 = int_to_ptr.vmem [resolvable:$true] %s57
      %63 = dma.hbm_to_vmem [thread:$0]  %s3, 4096, %s58, [#allocation9], 256, 256, 16
    $region17: #{tpu_custom_call.1} parent=1 // pred_fallthru
      _
    // Predicated region
    $region18: #{tpu_custom_call.1} parent=1 // pred_check
      _
    $region19: #{tpu_custom_call.1} parent=1 // pred_check_branch
      %65 = sbr.rel (0) target = $region21
    $region20: #{tpu_custom_call.1} parent=1 // pred_region
      _
    $region21: #{tpu_custom_call.1} parent=1 // pred_fallthru
      _
    // Predicated region
    $region22: #{tpu_custom_call.1} parent=1 // pred_check
      _
    $region23: #{tpu_custom_call.1} parent=1 // pred_check_branch
      %67 = sbr.rel (0) target = $region25
    $region24: #{tpu_custom_call.1} parent=1 // pred_region
      %s69 = ssub.s32 12288, 12288
      %70 = vsyncadd [#allocation9], %s69
      %s71 = sshll.u32 [#allocation10], 4
      %s72 = int_to_ptr.vmem [resolvable:$true] %s71
      %77 = dma.hbm_to_vmem [thread:$0]  %s5, 12288, %s72, [#allocation9], 192, 192, 12
    $region25: #{tpu_custom_call.1} parent=1 // pred_fallthru
      _
    // Predicated region
    $region26: #{tpu_custom_call.1} parent=1 // pred_check
      _
    $region27: #{tpu_custom_call.1} parent=1 // pred_check_branch
      %79 = sbr.rel (0) target = $region29
    $region28: #{tpu_custom_call.1} parent=1 // pred_region
      _
    $region29: #{tpu_custom_call.1} parent=1 // pred_fallthru
      _
    // Predicated region
    $region30: #{tpu_custom_call.1} parent=1 // pred_check
      _
    $region31: #{tpu_custom_call.1} parent=1 // pred_check_branch
      %81 = sbr.rel (0) target = $region33
    $region32: #{tpu_custom_call.1} parent=1 // pred_region
      %82 = dma.done [#allocation3], 1152
    $region33: #{tpu_custom_call.1} parent=1 // pred_fallthru
      _
    // Predicated region
    $region34: #{tpu_custom_call.1} parent=1 // pred_check
      _
    $region35: #{tpu_custom_call.1} parent=1 // pred_check_branch
      %84 = sbr.rel (0) target = $region37
    $region36: #{tpu_custom_call.1} parent=1 // pred_region
      %85 = dma.done [#allocation6], 1152
    $region37: #{tpu_custom_call.1} parent=1 // pred_fallthru
      _
    // Predicated region
    $region38: #{tpu_custom_call.1} parent=1 // pred_check
      _
    $region39: #{tpu_custom_call.1} parent=1 // pred_check_branch
      %87 = sbr.rel (0) target = $region41
    $region40: #{tpu_custom_call.1} parent=1 // pred_region
      %88 = dma.done [#allocation6], 4096
    $region41: #{tpu_custom_call.1} parent=1 // pred_fallthru
      _
    // Predicated region
    $region42: #{tpu_custom_call.1} parent=1 // pred_check
      _
    $region43: #{tpu_custom_call.1} parent=1 // pred_check_branch
      %90 = sbr.rel (0) target = $region45
    $region44: #{tpu_custom_call.1} parent=1 // pred_region
      %91 = dma.done [#allocation9], 4096
    $region45: #{tpu_custom_call.1} parent=1 // pred_fallthru
      _
    // Predicated region
    $region46: #{tpu_custom_call.1} parent=1 // pred_check
      _
    $region47: #{tpu_custom_call.1} parent=1 // pred_check_branch
      %93 = sbr.rel (0) target = $region49
    $region48: #{tpu_custom_call.1} parent=1 // pred_region
      %94 = dma.done [#allocation9], 12288
    $region49: #{tpu_custom_call.1} parent=1 // pred_fallthru
      _
    %v96 = vld [vmem:[#allocation2] sm:$0xf]
    %v97 = vld [vmem:[#allocation2 + $0x4] sm:$0xf]
    %v98 = vld [vmem:[#allocation2 + $0x8] sm:$0xf]
    %v99 = vld [vmem:[#allocation2 + $0xc] sm:$0xf]
    %v100 = vld [vmem:[#allocation2 + $0x10] sm:$0xf]
    %v101 = vld [vmem:[#allocation2 + $0x14] sm:$0xf]
    %v102 = vld [vmem:[#allocation2 + $0x18] sm:$0xf]
    %v103 = vld [vmem:[#allocation2 + $0x1c] sm:$0xf]
    %v104 = vld [vmem:[#allocation2 + $0x20] sm:$0xf]
    %v105 = vld [vmem:[#allocation2 + $0x24] sm:$0xf]
    %v106 = vld [vmem:[#allocation2 + $0x28] sm:$0xf]
    %v107 = vld [vmem:[#allocation2 + $0x2c] sm:$0xf]
    %v108 = vld [vmem:[#allocation2 + $0x30] sm:$0xf]
    %v109 = vld [vmem:[#allocation2 + $0x34] sm:$0xf]
    %v110 = vld [vmem:[#allocation2 + $0x38] sm:$0xf]
    %v111 = vld [vmem:[#allocation2 + $0x3c] sm:$0xf]
    %v112 = vld [vmem:[#allocation2 + $0x40] sm:$0xf]
    %v113 = vld [vmem:[#allocation2 + $0x44] sm:$0xf]
    %v114 = vld [vmem:[#allocation7] sm:$0xff]
    %v115 = vld [vmem:[#allocation7 + $0x8] sm:$0xff]
    %v116 = vld [vmem:[#allocation7 + $0x10] sm:$0xff]
    %v117 = vld [vmem:[#allocation7 + $0x18] sm:$0xff]
    %v118 = vld [vmem:[#allocation7 + $0x20] sm:$0xff]
    %v119 = vld [vmem:[#allocation7 + $0x28] sm:$0xff]
    %v120 = vld [vmem:[#allocation7 + $0x30] sm:$0xff]
    %v121 = vld [vmem:[#allocation7 + $0x38] sm:$0xff]
    %v122 = vld [vmem:[#allocation7 + $0x40] sm:$0xff]
    %v123 = vld [vmem:[#allocation7 + $0x48] sm:$0xff]
    %v124 = vld [vmem:[#allocation7 + $0x50] sm:$0xff]
    %v125 = vld [vmem:[#allocation7 + $0x58] sm:$0xff]
    %v126 = vld [vmem:[#allocation7 + $0x60] sm:$0xff]
    %v127 = vld [vmem:[#allocation7 + $0x68] sm:$0xff]
    %v128 = vld [vmem:[#allocation7 + $0x70] sm:$0xff]
    %v129 = vld [vmem:[#allocation7 + $0x78] sm:$0xff]
    %v130 = vld [vmem:[#allocation7 + $0x80] sm:$0xff]
    %v131 = vld [vmem:[#allocation7 + $0x88] sm:$0xff]
    %v132 = vld [vmem:[#allocation7 + $0x90] sm:$0xff]
    %v133 = vld [vmem:[#allocation7 + $0x98] sm:$0xff]
    %v134 = vld [vmem:[#allocation7 + $0xa0] sm:$0xff]
    %v135 = vld [vmem:[#allocation7 + $0xa8] sm:$0xff]
    %v136 = vld [vmem:[#allocation7 + $0xb0] sm:$0xff]
    %v137 = vld [vmem:[#allocation7 + $0xb8] sm:$0xff]
    %v138 = vld [vmem:[#allocation7 + $0xc0] sm:$0xff]
    %v139 = vld [vmem:[#allocation7 + $0xc8] sm:$0xff]
    %v140 = vld [vmem:[#allocation7 + $0xd0] sm:$0xff]
    %v141 = vld [vmem:[#allocation7 + $0xd8] sm:$0xff]
    %v142 = vld [vmem:[#allocation7 + $0xe0] sm:$0xff]
    %v143 = vld [vmem:[#allocation7 + $0xe8] sm:$0xff]
    %v144 = vld [vmem:[#allocation7 + $0xf0] sm:$0xff]
    %v145 = vld [vmem:[#allocation7 + $0xf8] sm:$0xff]
    %v146 = vld [vmem:[#allocation5] sm:$0xf]
    %v147 = vld [vmem:[#allocation5 + $0x4] sm:$0xf]
    %v148 = vld [vmem:[#allocation5 + $0x8] sm:$0xf]
    %v149 = vld [vmem:[#allocation5 + $0xc] sm:$0xf]
    %v150 = vld [vmem:[#allocation5 + $0x10] sm:$0xf]
    %v151 = vld [vmem:[#allocation5 + $0x14] sm:$0xf]
    %v152 = vld [vmem:[#allocation5 + $0x18] sm:$0xf]
    %v153 = vld [vmem:[#allocation5 + $0x1c] sm:$0xf]
    %v154 = vld [vmem:[#allocation5 + $0x20] sm:$0xf]
    %v155 = vld [vmem:[#allocation5 + $0x24] sm:$0xf]
    %v156 = vld [vmem:[#allocation5 + $0x28] sm:$0xf]
    %v157 = vld [vmem:[#allocation5 + $0x2c] sm:$0xf]
    %v158 = vld [vmem:[#allocation5 + $0x30] sm:$0xf]
    %v159 = vld [vmem:[#allocation5 + $0x34] sm:$0xf]
    %v160 = vld [vmem:[#allocation5 + $0x38] sm:$0xf]
    %v161 = vld [vmem:[#allocation5 + $0x3c] sm:$0xf]
    %v162 = vld [vmem:[#allocation5 + $0x40] sm:$0xf]
    %v163 = vld [vmem:[#allocation5 + $0x44] sm:$0xf]
    %v164 = vld [vmem:[#allocation8] sm:$0xff]
    %v165 = vld [vmem:[#allocation8 + $0x8] sm:$0xff]
    %v166 = vld [vmem:[#allocation8 + $0x10] sm:$0xff]
    %v167 = vld [vmem:[#allocation8 + $0x18] sm:$0xff]
    %v168 = vld [vmem:[#allocation8 + $0x20] sm:$0xff]
    %v169 = vld [vmem:[#allocation8 + $0x28] sm:$0xff]
    %v170 = vld [vmem:[#allocation8 + $0x30] sm:$0xff]
    %v171 = vld [vmem:[#allocation8 + $0x38] sm:$0xff]
    %v172 = vld [vmem:[#allocation8 + $0x40] sm:$0xff]
    %v173 = vld [vmem:[#allocation8 + $0x48] sm:$0xff]
    %v174 = vld [vmem:[#allocation8 + $0x50] sm:$0xff]
    %v175 = vld [vmem:[#allocation8 + $0x58] sm:$0xff]
    %v176 = vld [vmem:[#allocation8 + $0x60] sm:$0xff]
    %v177 = vld [vmem:[#allocation8 + $0x68] sm:$0xff]
    %v178 = vld [vmem:[#allocation8 + $0x70] sm:$0xff]
    %v179 = vld [vmem:[#allocation8 + $0x78] sm:$0xff]
    %v180 = vld [vmem:[#allocation8 + $0x80] sm:$0xff]
    %v181 = vld [vmem:[#allocation8 + $0x88] sm:$0xff]
    %v182 = vld [vmem:[#allocation8 + $0x90] sm:$0xff]
    %v183 = vld [vmem:[#allocation8 + $0x98] sm:$0xff]
    %v184 = vld [vmem:[#allocation8 + $0xa0] sm:$0xff]
    %v185 = vld [vmem:[#allocation8 + $0xa8] sm:$0xff]
    %v186 = vld [vmem:[#allocation8 + $0xb0] sm:$0xff]
    %v187 = vld [vmem:[#allocation8 + $0xb8] sm:$0xff]
    %v188 = vld [vmem:[#allocation8 + $0xc0] sm:$0xff]
    %v189 = vld [vmem:[#allocation8 + $0xc8] sm:$0xff]
    %v190 = vld [vmem:[#allocation8 + $0xd0] sm:$0xff]
    %v191 = vld [vmem:[#allocation8 + $0xd8] sm:$0xff]
    %v192 = vld [vmem:[#allocation8 + $0xe0] sm:$0xff]
    %v193 = vld [vmem:[#allocation8 + $0xe8] sm:$0xff]
    %v194 = vld [vmem:[#allocation8 + $0xf0] sm:$0xff]
    %v195 = vld [vmem:[#allocation8 + $0xf8] sm:$0xff]
    %v214 = vunpack.c.l.b16 %v146
    %v215 = vunpack.c.l.b16 %v147
    %v216 = vunpack.c.l.b16 %v148
    %v217 = vunpack.c.l.b16 %v149
    %v218 = vunpack.c.l.b16 %v150
    %v219 = vunpack.c.l.b16 %v151
    %v220 = vunpack.c.l.b16 %v152
    %v221 = vunpack.c.l.b16 %v153
    %v222 = vunpack.c.l.b16 %v154
    %v223 = vunpack.c.l.b16 %v155
    %v224 = vunpack.c.l.b16 %v156
    %v225 = vunpack.c.l.b16 %v157
    %v226 = vunpack.c.l.b16 %v158
    %v227 = vunpack.c.l.b16 %v159
    %v228 = vunpack.c.l.b16 %v160
    %v229 = vunpack.c.l.b16 %v161
    %v230 = vunpack.c.l.b16 %v162
    %v231 = vunpack.c.l.b16 %v163
    %v232 = vpack.c.b16 %v215, %v214
    %v233 = vpack.c.b16 %v217, %v216
    %v234 = vpack.c.b16 %v219, %v218
    %v235 = vpack.c.b16 %v221, %v220
    %v236 = vpack.c.b16 %v223, %v222
    %v237 = vpack.c.b16 %v225, %v224
    %v238 = vpack.c.b16 %v227, %v226
    %v239 = vpack.c.b16 %v229, %v228
    %v240 = vpack.c.b16 %v231, %v230
    %v282 = vunpack.c.l.b16 %v164
    %v283 = vunpack.c.h.b16 %v164
    %v284 = vunpack.c.l.b16 %v165
    %v285 = vunpack.c.h.b16 %v165
    %v286 = vunpack.c.l.b16 %v166
    %v287 = vunpack.c.h.b16 %v166
    %v288 = vunpack.c.l.b16 %v167
    %v289 = vunpack.c.h.b16 %v167
    %v290 = vunpack.c.l.b16 %v168
    %v291 = vunpack.c.h.b16 %v168
    %v292 = vunpack.c.l.b16 %v169
    %v293 = vunpack.c.h.b16 %v169
    %v294 = vunpack.c.l.b16 %v170
    %v295 = vunpack.c.h.b16 %v170
    %v296 = vunpack.c.l.b16 %v171
    %v297 = vunpack.c.h.b16 %v171
    %v298 = vunpack.c.l.b16 %v172
    %v299 = vunpack.c.h.b16 %v172
    %v300 = vunpack.c.l.b16 %v173
    %v301 = vunpack.c.h.b16 %v173
    %v302 = vunpack.c.l.b16 %v174
    %v303 = vunpack.c.h.b16 %v174
    %v304 = vunpack.c.l.b16 %v175
    %v305 = vunpack.c.h.b16 %v175
    %v306 = vunpack.c.l.b16 %v176
    %v307 = vunpack.c.h.b16 %v176
    %v308 = vunpack.c.l.b16 %v177
    %v309 = vunpack.c.h.b16 %v177
    %v310 = vunpack.c.l.b16 %v178
    %v311 = vunpack.c.h.b16 %v178
    %v312 = vunpack.c.l.b16 %v179
    %v313 = vunpack.c.h.b16 %v179
    %v314 = vunpack.c.l.b16 %v180
    %v315 = vunpack.c.h.b16 %v180
    %v316 = vunpack.c.l.b16 %v181
    %v317 = vunpack.c.h.b16 %v181
    %v318 = vunpack.c.l.b16 %v182
    %v319 = vunpack.c.h.b16 %v182
    %v320 = vunpack.c.l.b16 %v183
    %v321 = vunpack.c.h.b16 %v183
    %v322 = vunpack.c.l.b16 %v184
    %v323 = vunpack.c.h.b16 %v184
    %v324 = vunpack.c.l.b16 %v185
    %v325 = vunpack.c.h.b16 %v185
    %v326 = vunpack.c.l.b16 %v186
    %v327 = vunpack.c.h.b16 %v186
    %v328 = vunpack.c.l.b16 %v187
    %v329 = vunpack.c.h.b16 %v187
    %v330 = vunpack.c.l.b16 %v188
    %v331 = vunpack.c.h.b16 %v188
    %v332 = vunpack.c.l.b16 %v189
    %v333 = vunpack.c.h.b16 %v189
    %v334 = vunpack.c.l.b16 %v190
    %v335 = vunpack.c.h.b16 %v190
    %v336 = vunpack.c.l.b16 %v191
    %v337 = vunpack.c.h.b16 %v191
    %v338 = vunpack.c.l.b16 %v192
    %v339 = vunpack.c.h.b16 %v192
    %v340 = vunpack.c.l.b16 %v193
    %v341 = vunpack.c.h.b16 %v193
    %v342 = vunpack.c.l.b16 %v194
    %v343 = vunpack.c.h.b16 %v194
    %v344 = vunpack.c.l.b16 %v195
    %v345 = vunpack.c.h.b16 %v195
    %v346 = vpack.c.b16 %v286, %v282
    %v347 = vpack.c.b16 %v287, %v283
    %v348 = vpack.c.b16 %v288, %v284
    %v349 = vpack.c.b16 %v289, %v285
    %v350 = vpack.c.b16 %v294, %v290
    %v351 = vpack.c.b16 %v295, %v291
    %v352 = vpack.c.b16 %v296, %v292
    %v353 = vpack.c.b16 %v297, %v293
    %v354 = vpack.c.b16 %v302, %v298
    %v355 = vpack.c.b16 %v303, %v299
    %v356 = vpack.c.b16 %v304, %v300
    %v357 = vpack.c.b16 %v305, %v301
    %v358 = vpack.c.b16 %v310, %v306
    %v359 = vpack.c.b16 %v311, %v307
    %v360 = vpack.c.b16 %v312, %v308
    %v361 = vpack.c.b16 %v313, %v309
    %v362 = vpack.c.b16 %v318, %v314
    %v363 = vpack.c.b16 %v319, %v315
    %v364 = vpack.c.b16 %v320, %v316
    %v365 = vpack.c.b16 %v321, %v317
    %v366 = vpack.c.b16 %v326, %v322
    %v367 = vpack.c.b16 %v327, %v323
    %v368 = vpack.c.b16 %v328, %v324
    %v369 = vpack.c.b16 %v329, %v325
    %v370 = vpack.c.b16 %v334, %v330
    %v371 = vpack.c.b16 %v335, %v331
    %v372 = vpack.c.b16 %v336, %v332
    %v373 = vpack.c.b16 %v337, %v333
    %v374 = vpack.c.b16 %v342, %v338
    %v375 = vpack.c.b16 %v343, %v339
    %v376 = vpack.c.b16 %v344, %v340
    %v377 = vpack.c.b16 %v345, %v341
    %410 = vmatprep.subr.bf16.mxu0 %v347
    %411 = vmatpush1.bf16.msra.mxu0 %v346
    %412 = vmatprep.subr.bf16.mxu0 %v351
    %413 = vmatpush1.bf16.msra.mxu0 %v350
    %414 = vmatprep.subr.bf16.mxu0 %v355
    %415 = vmatpush1.bf16.msra.mxu0 %v354
    %416 = vmatprep.subr.bf16.mxu0 %v359
    %417 = vmatpush1.bf16.msra.mxu0 %v358
    %418 = vmatprep.subr.bf16.mxu0 %v363
    %419 = vmatpush1.bf16.msra.mxu0 %v362
    %420 = vmatprep.subr.bf16.mxu0 %v367
    %421 = vmatpush1.bf16.msra.mxu0 %v366
    %422 = vmatprep.subr.bf16.mxu0 %v371
    %423 = vmatpush1.bf16.msra.mxu0 %v370
    %424 = vmatprep.subr.bf16.mxu0 %v375
    %425 = vmatpush1.bf16.msra.mxu0 %v374
    %426 = vmatprep.subr.bf16.mxu0 0
    %427 = vmatpush1.bf16.msra.mxu0 0
    %428 = vmatprep.subr.bf16.mxu0 0
    %429 = vmatpush1.bf16.msra.mxu0 0
    %430 = vmatprep.subr.bf16.mxu0 0
    %431 = vmatpush1.bf16.msra.mxu0 0
    %432 = vmatprep.subr.bf16.mxu0 0
    %433 = vmatpush1.bf16.msra.mxu0 0
    %434 = vmatprep.subr.bf16.mxu0 0
    %435 = vmatpush1.bf16.msra.mxu0 0
    %436 = vmatprep.subr.bf16.mxu0 0
    %437 = vmatpush1.bf16.msra.mxu0 0
    %438 = vmatprep.subr.bf16.mxu0 0
    %439 = vmatpush1.bf16.msra.mxu0 0
    %440 = vmatprep.subr.bf16.mxu0 0
    %441 = vmatpush1.bf16.msra.mxu0 0
    %442 = vmatprep.mubr.bf16.mxu0 0
    %443 = vmatmul.mubr.bf16.gmra.mrb[0].mxu0 %v232
    %v444 = vpop.f32.mrb[0].mxu0
    %v445 = vadd.f32 0.0, %v444
    %v446 = vpop.f32.mrb[0].mxu0
    %v447 = vadd.f32 0.0, %v446
    %v448 = vpop.f32.mrb[0].mxu0
    %v449 = vadd.f32 0.0, %v448
    %v450 = vpop.f32.mrb[0].mxu0
    %v451 = vadd.f32 0.0, %v450
    %452 = vmatprep.mubr.bf16.mxu0 0
    %453 = vmatmul.mubr.bf16.gmra.mrb[0].mxu0 %v233
    %v454 = vpop.f32.mrb[0].mxu0
    %v455 = vadd.f32 0.0, %v454
    %v456 = vpop.f32.mrb[0].mxu0
    %v457 = vadd.f32 0.0, %v456
    %v458 = vpop.f32.mrb[0].mxu0
    %v459 = vadd.f32 0.0, %v458
    %v460 = vpop.f32.mrb[0].mxu0
    %v461 = vadd.f32 0.0, %v460
    %462 = vmatprep.mubr.bf16.mxu0 0
    %463 = vmatmul.mubr.bf16.gmra.mrb[0].mxu0 %v234
    %v464 = vpop.f32.mrb[0].mxu0
    %v465 = vadd.f32 0.0, %v464
    %v466 = vpop.f32.mrb[0].mxu0
    %v467 = vadd.f32 0.0, %v466
    %v468 = vpop.f32.mrb[0].mxu0
    %v469 = vadd.f32 0.0, %v468
    %v470 = vpop.f32.mrb[0].mxu0
    %v471 = vadd.f32 0.0, %v470
    %472 = vmatprep.mubr.bf16.mxu0 0
    %473 = vmatmul.mubr.bf16.gmra.mrb[0].mxu0 %v235
    %v474 = vpop.f32.mrb[0].mxu0
    %v475 = vadd.f32 0.0, %v474
    %v476 = vpop.f32.mrb[0].mxu0
    %v477 = vadd.f32 0.0, %v476
    %v478 = vpop.f32.mrb[0].mxu0
    %v479 = vadd.f32 0.0, %v478
    %v480 = vpop.f32.mrb[0].mxu0
    %v481 = vadd.f32 0.0, %v480
    %482 = vmatprep.mubr.bf16.mxu0 0
    %483 = vmatmul.mubr.bf16.gmra.mrb[0].mxu0 %v236
    %v484 = vpop.f32.mrb[0].mxu0
    %v485 = vadd.f32 0.0, %v484
    %v486 = vpop.f32.mrb[0].mxu0
    %v487 = vadd.f32 0.0, %v486
    %v488 = vpop.f32.mrb[0].mxu0
    %v489 = vadd.f32 0.0, %v488
    %v490 = vpop.f32.mrb[0].mxu0
    %v491 = vadd.f32 0.0, %v490
    %492 = vmatprep.mubr.bf16.mxu0 0
    %493 = vmatmul.mubr.bf16.gmra.mrb[0].mxu0 %v237
    %v494 = vpop.f32.mrb[0].mxu0
    %v495 = vadd.f32 0.0, %v494
    %v496 = vpop.f32.mrb[0].mxu0
    %v497 = vadd.f32 0.0, %v496
    %v498 = vpop.f32.mrb[0].mxu0
    %v499 = vadd.f32 0.0, %v498
    %v500 = vpop.f32.mrb[0].mxu0
    %v501 = vadd.f32 0.0, %v500
    %502 = vmatprep.mubr.bf16.mxu0 0
    %503 = vmatmul.mubr.bf16.gmra.mrb[0].mxu0 %v238
    %v504 = vpop.f32.mrb[0].mxu0
    %v505 = vadd.f32 0.0, %v504
    %v506 = vpop.f32.mrb[0].mxu0
    %v507 = vadd.f32 0.0, %v506
    %v508 = vpop.f32.mrb[0].mxu0
    %v509 = vadd.f32 0.0, %v508
    %v510 = vpop.f32.mrb[0].mxu0
    %v511 = vadd.f32 0.0, %v510
    %512 = vmatprep.mubr.bf16.mxu0 0
    %513 = vmatmul.mubr.bf16.gmra.mrb[0].mxu0 %v239
    %v514 = vpop.f32.mrb[0].mxu0
    %v515 = vadd.f32 0.0, %v514
    %v516 = vpop.f32.mrb[0].mxu0
    %v517 = vadd.f32 0.0, %v516
    %v518 = vpop.f32.mrb[0].mxu0
    %v519 = vadd.f32 0.0, %v518
    %v520 = vpop.f32.mrb[0].mxu0
    %v521 = vadd.f32 0.0, %v520
    %522 = vmatprep.mubr.bf16.mxu0 0
    %523 = vmatmul.mubr.bf16.gmra.mrb[0].mxu0 %v240
    %v524 = vpop.f32.mrb[0].mxu0
    %v525 = vadd.f32 0.0, %v524
    %v526 = vpop.f32.mrb[0].mxu0
    %v527 = vadd.f32 0.0, %v526
    %v528 = vpop.f32.mrb[0].mxu0
    %v529 = vadd.f32 0.0, %v528
    %v530 = vpop.f32.mrb[0].mxu0
    %v531 = vadd.f32 0.0, %v530
    %532 = vdwg.mxu0
    %533 = vmatprep.subr.bf16.mxu0 %v349
    %534 = vmatpush1.bf16.msra.mxu0 %v348
    %535 = vmatprep.subr.bf16.mxu0 %v353
    %536 = vmatpush1.bf16.msra.mxu0 %v352
    %537 = vmatprep.subr.bf16.mxu0 %v357
    %538 = vmatpush1.bf16.msra.mxu0 %v356
    %539 = vmatprep.subr.bf16.mxu0 %v361
    %540 = vmatpush1.bf16.msra.mxu0 %v360
    %541 = vmatprep.subr.bf16.mxu0 %v365
    %542 = vmatpush1.bf16.msra.mxu0 %v364
    %543 = vmatprep.subr.bf16.mxu0 %v369
    %544 = vmatpush1.bf16.msra.mxu0 %v368
    %545 = vmatprep.subr.bf16.mxu0 %v373
    %546 = vmatpush1.bf16.msra.mxu0 %v372
    %547 = vmatprep.subr.bf16.mxu0 %v377
    %548 = vmatpush1.bf16.msra.mxu0 %v376
    %549 = vmatprep.subr.bf16.mxu0 0
    %550 = vmatpush1.bf16.msra.mxu0 0
    %551 = vmatprep.subr.bf16.mxu0 0
    %552 = vmatpush1.bf16.msra.mxu0 0
    %553 = vmatprep.subr.bf16.mxu0 0
    %554 = vmatpush1.bf16.msra.mxu0 0
    %555 = vmatprep.subr.bf16.mxu0 0
    %556 = vmatpush1.bf16.msra.mxu0 0
    %557 = vmatprep.subr.bf16.mxu0 0
    %558 = vmatpush1.bf16.msra.mxu0 0
    %559 = vmatprep.subr.bf16.mxu0 0
    %560 = vmatpush1.bf16.msra.mxu0 0
    %561 = vmatprep.subr.bf16.mxu0 0
    %562 = vmatpush1.bf16.msra.mxu0 0
    %563 = vmatprep.subr.bf16.mxu0 0
    %564 = vmatpush1.bf16.msra.mxu0 0
    %565 = vmatprep.mubr.bf16.mxu0 0
    %566 = vmatmul.mubr.bf16.gmra.mrb[0].mxu0 %v232
    %v567 = vpop.f32.mrb[0].mxu0
    %v568 = vadd.f32 0.0, %v567
    %v569 = vpop.f32.mrb[0].mxu0
    %v570 = vadd.f32 0.0, %v569
    %v571 = vpop.f32.mrb[0].mxu0
    %v572 = vadd.f32 0.0, %v571
    %v573 = vpop.f32.mrb[0].mxu0
    %v574 = vadd.f32 0.0, %v573
    %575 = vmatprep.mubr.bf16.mxu0 0
    %576 = vmatmul.mubr.bf16.gmra.mrb[0].mxu0 %v233
    %v577 = vpop.f32.mrb[0].mxu0
    %v578 = vadd.f32 0.0, %v577
    %v579 = vpop.f32.mrb[0].mxu0
    %v580 = vadd.f32 0.0, %v579
    %v581 = vpop.f32.mrb[0].mxu0
    %v582 = vadd.f32 0.0, %v581
    %v583 = vpop.f32.mrb[0].mxu0
    %v584 = vadd.f32 0.0, %v583
    %585 = vmatprep.mubr.bf16.mxu0 0
    %586 = vmatmul.mubr.bf16.gmra.mrb[0].mxu0 %v234
    %v587 = vpop.f32.mrb[0].mxu0
    %v588 = vadd.f32 0.0, %v587
    %v589 = vpop.f32.mrb[0].mxu0
    %v590 = vadd.f32 0.0, %v589
    %v591 = vpop.f32.mrb[0].mxu0
    %v592 = vadd.f32 0.0, %v591
    %v593 = vpop.f32.mrb[0].mxu0
    %v594 = vadd.f32 0.0, %v593
    %595 = vmatprep.mubr.bf16.mxu0 0
    %596 = vmatmul.mubr.bf16.gmra.mrb[0].mxu0 %v235
    %v597 = vpop.f32.mrb[0].mxu0
    %v598 = vadd.f32 0.0, %v597
    %v599 = vpop.f32.mrb[0].mxu0
    %v600 = vadd.f32 0.0, %v599
    %v601 = vpop.f32.mrb[0].mxu0
    %v602 = vadd.f32 0.0, %v601
    %v603 = vpop.f32.mrb[0].mxu0
    %v604 = vadd.f32 0.0, %v603
    %605 = vmatprep.mubr.bf16.mxu0 0
    %606 = vmatmul.mubr.bf16.gmra.mrb[0].mxu0 %v236
    %v607 = vpop.f32.mrb[0].mxu0
    %v608 = vadd.f32 0.0, %v607
    %v609 = vpop.f32.mrb[0].mxu0
    %v610 = vadd.f32 0.0, %v609
    %v611 = vpop.f32.mrb[0].mxu0
    %v612 = vadd.f32 0.0, %v611
    %v613 = vpop.f32.mrb[0].mxu0
    %v614 = vadd.f32 0.0, %v613
    %615 = vmatprep.mubr.bf16.mxu0 0
    %616 = vmatmul.mubr.bf16.gmra.mrb[0].mxu0 %v237
    %v617 = vpop.f32.mrb[0].mxu0
    %v618 = vadd.f32 0.0, %v617
    %v619 = vpop.f32.mrb[0].mxu0
    %v620 = vadd.f32 0.0, %v619
    %v621 = vpop.f32.mrb[0].mxu0
    %v622 = vadd.f32 0.0, %v621
    %v623 = vpop.f32.mrb[0].mxu0
    %v624 = vadd.f32 0.0, %v623
    %625 = vmatprep.mubr.bf16.mxu0 0
    %626 = vmatmul.mubr.bf16.gmra.mrb[0].mxu0 %v238
    %v627 = vpop.f32.mrb[0].mxu0
    %v628 = vadd.f32 0.0, %v627
    %v629 = vpop.f32.mrb[0].mxu0
    %v630 = vadd.f32 0.0, %v629
    %v631 = vpop.f32.mrb[0].mxu0
    %v632 = vadd.f32 0.0, %v631
    %v633 = vpop.f32.mrb[0].mxu0
    %v634 = vadd.f32 0.0, %v633
    %635 = vmatprep.mubr.bf16.mxu0 0
    %636 = vmatmul.mubr.bf16.gmra.mrb[0].mxu0 %v239
    %v637 = vpop.f32.mrb[0].mxu0
    %v638 = vadd.f32 0.0, %v637
    %v639 = vpop.f32.mrb[0].mxu0
    %v640 = vadd.f32 0.0, %v639
    %v641 = vpop.f32.mrb[0].mxu0
    %v642 = vadd.f32 0.0, %v641
    %v643 = vpop.f32.mrb[0].mxu0
    %v644 = vadd.f32 0.0, %v643
    %645 = vmatprep.mubr.bf16.mxu0 0
    %646 = vmatmul.mubr.bf16.gmra.mrb[0].mxu0 %v240
    %v647 = vpop.f32.mrb[0].mxu0
    %v648 = vadd.f32 0.0, %v647
    %v649 = vpop.f32.mrb[0].mxu0
    %v650 = vadd.f32 0.0, %v649
    %v651 = vpop.f32.mrb[0].mxu0
    %v652 = vadd.f32 0.0, %v651
    %v653 = vpop.f32.mrb[0].mxu0
    %v654 = vadd.f32 0.0, %v653
    %655 = vdwg.mxu0
    %v674 = vunpack.c.l.b16 %v96
    %v675 = vunpack.c.l.b16 %v97
    %v676 = vunpack.c.l.b16 %v98
    %v677 = vunpack.c.l.b16 %v99
    %v678 = vunpack.c.l.b16 %v100
    %v679 = vunpack.c.l.b16 %v101
    %v680 = vunpack.c.l.b16 %v102
    %v681 = vunpack.c.l.b16 %v103
    %v682 = vunpack.c.l.b16 %v104
    %v683 = vunpack.c.l.b16 %v105
    %v684 = vunpack.c.l.b16 %v106
    %v685 = vunpack.c.l.b16 %v107
    %v686 = vunpack.c.l.b16 %v108
    %v687 = vunpack.c.l.b16 %v109
    %v688 = vunpack.c.l.b16 %v110
    %v689 = vunpack.c.l.b16 %v111
    %v690 = vunpack.c.l.b16 %v112
    %v691 = vunpack.c.l.b16 %v113
    %v692 = vpack.c.b16 %v675, %v674
    %v693 = vpack.c.b16 %v677, %v676
    %v694 = vpack.c.b16 %v679, %v678
    %v695 = vpack.c.b16 %v681, %v680
    %v696 = vpack.c.b16 %v683, %v682
    %v697 = vpack.c.b16 %v685, %v684
    %v698 = vpack.c.b16 %v687, %v686
    %v699 = vpack.c.b16 %v689, %v688
    %v700 = vpack.c.b16 %v691, %v690
    %v742 = vunpack.c.l.b16 %v114
    %v743 = vunpack.c.h.b16 %v114
    %v744 = vunpack.c.l.b16 %v115
    %v745 = vunpack.c.h.b16 %v115
    %v746 = vunpack.c.l.b16 %v116
    %v747 = vunpack.c.h.b16 %v116
    %v748 = vunpack.c.l.b16 %v117
    %v749 = vunpack.c.h.b16 %v117
    %v750 = vunpack.c.l.b16 %v118
    %v751 = vunpack.c.h.b16 %v118
    %v752 = vunpack.c.l.b16 %v119
    %v753 = vunpack.c.h.b16 %v119
    %v754 = vunpack.c.l.b16 %v120
    %v755 = vunpack.c.h.b16 %v120
    %v756 = vunpack.c.l.b16 %v121
    %v757 = vunpack.c.h.b16 %v121
    %v758 = vunpack.c.l.b16 %v122
    %v759 = vunpack.c.h.b16 %v122
    %v760 = vunpack.c.l.b16 %v123
    %v761 = vunpack.c.h.b16 %v123
    %v762 = vunpack.c.l.b16 %v124
    %v763 = vunpack.c.h.b16 %v124
    %v764 = vunpack.c.l.b16 %v125
    %v765 = vunpack.c.h.b16 %v125
    %v766 = vunpack.c.l.b16 %v126
    %v767 = vunpack.c.h.b16 %v126
    %v768 = vunpack.c.l.b16 %v127
    %v769 = vunpack.c.h.b16 %v127
    %v770 = vunpack.c.l.b16 %v128
    %v771 = vunpack.c.h.b16 %v128
    %v772 = vunpack.c.l.b16 %v129
    %v773 = vunpack.c.h.b16 %v129
    %v774 = vunpack.c.l.b16 %v130
    %v775 = vunpack.c.h.b16 %v130
    %v776 = vunpack.c.l.b16 %v131
    %v777 = vunpack.c.h.b16 %v131
    %v778 = vunpack.c.l.b16 %v132
    %v779 = vunpack.c.h.b16 %v132
    %v780 = vunpack.c.l.b16 %v133
    %v781 = vunpack.c.h.b16 %v133
    %v782 = vunpack.c.l.b16 %v134
    %v783 = vunpack.c.h.b16 %v134
    %v784 = vunpack.c.l.b16 %v135
    %v785 = vunpack.c.h.b16 %v135
    %v786 = vunpack.c.l.b16 %v136
    %v787 = vunpack.c.h.b16 %v136
    %v788 = vunpack.c.l.b16 %v137
    %v789 = vunpack.c.h.b16 %v137
    %v790 = vunpack.c.l.b16 %v138
    %v791 = vunpack.c.h.b16 %v138
    %v792 = vunpack.c.l.b16 %v139
    %v793 = vunpack.c.h.b16 %v139
    %v794 = vunpack.c.l.b16 %v140
    %v795 = vunpack.c.h.b16 %v140
    %v796 = vunpack.c.l.b16 %v141
    %v797 = vunpack.c.h.b16 %v141
    %v798 = vunpack.c.l.b16 %v142
    %v799 = vunpack.c.h.b16 %v142
    %v800 = vunpack.c.l.b16 %v143
    %v801 = vunpack.c.h.b16 %v143
    %v802 = vunpack.c.l.b16 %v144
    %v803 = vunpack.c.h.b16 %v144
    %v804 = vunpack.c.l.b16 %v145
    %v805 = vunpack.c.h.b16 %v145
    %v806 = vpack.c.b16 %v746, %v742
    %v807 = vpack.c.b16 %v747, %v743
    %v808 = vpack.c.b16 %v748, %v744
    %v809 = vpack.c.b16 %v749, %v745
    %v810 = vpack.c.b16 %v754, %v750
    %v811 = vpack.c.b16 %v755, %v751
    %v812 = vpack.c.b16 %v756, %v752
    %v813 = vpack.c.b16 %v757, %v753
    %v814 = vpack.c.b16 %v762, %v758
    %v815 = vpack.c.b16 %v763, %v759
    %v816 = vpack.c.b16 %v764, %v760
    %v817 = vpack.c.b16 %v765, %v761
    %v818 = vpack.c.b16 %v770, %v766
    %v819 = vpack.c.b16 %v771, %v767
    %v820 = vpack.c.b16 %v772, %v768
    %v821 = vpack.c.b16 %v773, %v769
    %v822 = vpack.c.b16 %v778, %v774
    %v823 = vpack.c.b16 %v779, %v775
    %v824 = vpack.c.b16 %v780, %v776
    %v825 = vpack.c.b16 %v781, %v777
    %v826 = vpack.c.b16 %v786, %v782
    %v827 = vpack.c.b16 %v787, %v783
    %v828 = vpack.c.b16 %v788, %v784
    %v829 = vpack.c.b16 %v789, %v785
    %v830 = vpack.c.b16 %v794, %v790
    %v831 = vpack.c.b16 %v795, %v791
    %v832 = vpack.c.b16 %v796, %v792
    %v833 = vpack.c.b16 %v797, %v793
    %v834 = vpack.c.b16 %v802, %v798
    %v835 = vpack.c.b16 %v803, %v799
    %v836 = vpack.c.b16 %v804, %v800
    %v837 = vpack.c.b16 %v805, %v801
    %870 = vmatprep.subr.bf16.mxu0 %v807
    %871 = vmatpush1.bf16.msra.mxu0 %v806
    %872 = vmatprep.subr.bf16.mxu0 %v811
    %873 = vmatpush1.bf16.msra.mxu0 %v810
    %874 = vmatprep.subr.bf16.mxu0 %v815
    %875 = vmatpush1.bf16.msra.mxu0 %v814
    %876 = vmatprep.subr.bf16.mxu0 %v819
    %877 = vmatpush1.bf16.msra.mxu0 %v818
    %878 = vmatprep.subr.bf16.mxu0 %v823
    %879 = vmatpush1.bf16.msra.mxu0 %v822
    %880 = vmatprep.subr.bf16.mxu0 %v827
    %881 = vmatpush1.bf16.msra.mxu0 %v826
    %882 = vmatprep.subr.bf16.mxu0 %v831
    %883 = vmatpush1.bf16.msra.mxu0 %v830
    %884 = vmatprep.subr.bf16.mxu0 %v835
    %885 = vmatpush1.bf16.msra.mxu0 %v834
    %886 = vmatprep.subr.bf16.mxu0 0
    %887 = vmatpush1.bf16.msra.mxu0 0
    %888 = vmatprep.subr.bf16.mxu0 0
    %889 = vmatpush1.bf16.msra.mxu0 0
    %890 = vmatprep.subr.bf16.mxu0 0
    %891 = vmatpush1.bf16.msra.mxu0 0
    %892 = vmatprep.subr.bf16.mxu0 0
    %893 = vmatpush1.bf16.msra.mxu0 0
    %894 = vmatprep.subr.bf16.mxu0 0
    %895 = vmatpush1.bf16.msra.mxu0 0
    %896 = vmatprep.subr.bf16.mxu0 0
    %897 = vmatpush1.bf16.msra.mxu0 0
    %898 = vmatprep.subr.bf16.mxu0 0
    %899 = vmatpush1.bf16.msra.mxu0 0
    %900 = vmatprep.subr.bf16.mxu0 0
    %901 = vmatpush1.bf16.msra.mxu0 0
    %902 = vmatprep.mubr.bf16.mxu0 0
    %903 = vmatmul.mubr.bf16.gmra.mrb[0].mxu0 %v692
    %v904 = vpop.f32.mrb[0].mxu0
    %v905 = vadd.f32 %v445, %v904
    %v906 = vpop.f32.mrb[0].mxu0
    %v907 = vadd.f32 %v447, %v906
    %v908 = vpop.f32.mrb[0].mxu0
    %v909 = vadd.f32 %v449, %v908
    %v910 = vpop.f32.mrb[0].mxu0
    %v911 = vadd.f32 %v451, %v910
    %912 = vmatprep.mubr.bf16.mxu0 0
    %913 = vmatmul.mubr.bf16.gmra.mrb[0].mxu0 %v693
    %v914 = vpop.f32.mrb[0].mxu0
    %v915 = vadd.f32 %v455, %v914
    %v916 = vpop.f32.mrb[0].mxu0
    %v917 = vadd.f32 %v457, %v916
    %v918 = vpop.f32.mrb[0].mxu0
    %v919 = vadd.f32 %v459, %v918
    %v920 = vpop.f32.mrb[0].mxu0
    %v921 = vadd.f32 %v461, %v920
    %922 = vmatprep.mubr.bf16.mxu0 0
    %923 = vmatmul.mubr.bf16.gmra.mrb[0].mxu0 %v694
    %v924 = vpop.f32.mrb[0].mxu0
    %v925 = vadd.f32 %v465, %v924
    %v926 = vpop.f32.mrb[0].mxu0
    %v927 = vadd.f32 %v467, %v926
    %v928 = vpop.f32.mrb[0].mxu0
    %v929 = vadd.f32 %v469, %v928
    %v930 = vpop.f32.mrb[0].mxu0
    %v931 = vadd.f32 %v471, %v930
    %932 = vmatprep.mubr.bf16.mxu0 0
    %933 = vmatmul.mubr.bf16.gmra.mrb[0].mxu0 %v695
    %v934 = vpop.f32.mrb[0].mxu0
    %v935 = vadd.f32 %v475, %v934
    %v936 = vpop.f32.mrb[0].mxu0
    %v937 = vadd.f32 %v477, %v936
    %v938 = vpop.f32.mrb[0].mxu0
    %v939 = vadd.f32 %v479, %v938
    %v940 = vpop.f32.mrb[0].mxu0
    %v941 = vadd.f32 %v481, %v940
    %942 = vmatprep.mubr.bf16.mxu0 0
    %943 = vmatmul.mubr.bf16.gmra.mrb[0].mxu0 %v696
    %v944 = vpop.f32.mrb[0].mxu0
    %v945 = vadd.f32 %v485, %v944
    %v946 = vpop.f32.mrb[0].mxu0
    %v947 = vadd.f32 %v487, %v946
    %v948 = vpop.f32.mrb[0].mxu0
    %v949 = vadd.f32 %v489, %v948
    %v950 = vpop.f32.mrb[0].mxu0
    %v951 = vadd.f32 %v491, %v950
    %952 = vmatprep.mubr.bf16.mxu0 0
    %953 = vmatmul.mubr.bf16.gmra.mrb[0].mxu0 %v697
    %v954 = vpop.f32.mrb[0].mxu0
    %v955 = vadd.f32 %v495, %v954
    %v956 = vpop.f32.mrb[0].mxu0
    %v957 = vadd.f32 %v497, %v956
    %v958 = vpop.f32.mrb[0].mxu0
    %v959 = vadd.f32 %v499, %v958
    %v960 = vpop.f32.mrb[0].mxu0
    %v961 = vadd.f32 %v501, %v960
    %962 = vmatprep.mubr.bf16.mxu0 0
    %963 = vmatmul.mubr.bf16.gmra.mrb[0].mxu0 %v698
    %v964 = vpop.f32.mrb[0].mxu0
    %v965 = vadd.f32 %v505, %v964
    %v966 = vpop.f32.mrb[0].mxu0
    %v967 = vadd.f32 %v507, %v966
    %v968 = vpop.f32.mrb[0].mxu0
    %v969 = vadd.f32 %v509, %v968
    %v970 = vpop.f32.mrb[0].mxu0
    %v971 = vadd.f32 %v511, %v970
    %972 = vmatprep.mubr.bf16.mxu0 0
    %973 = vmatmul.mubr.bf16.gmra.mrb[0].mxu0 %v699
    %v974 = vpop.f32.mrb[0].mxu0
    %v975 = vadd.f32 %v515, %v974
    %v976 = vpop.f32.mrb[0].mxu0
    %v977 = vadd.f32 %v517, %v976
    %v978 = vpop.f32.mrb[0].mxu0
    %v979 = vadd.f32 %v519, %v978
    %v980 = vpop.f32.mrb[0].mxu0
    %v981 = vadd.f32 %v521, %v980
    %982 = vmatprep.mubr.bf16.mxu0 0
    %983 = vmatmul.mubr.bf16.gmra.mrb[0].mxu0 %v700
    %v984 = vpop.f32.mrb[0].mxu0
    %v985 = vadd.f32 %v525, %v984
    %v986 = vpop.f32.mrb[0].mxu0
    %v987 = vadd.f32 %v527, %v986
    %v988 = vpop.f32.mrb[0].mxu0
    %v989 = vadd.f32 %v529, %v988
    %v990 = vpop.f32.mrb[0].mxu0
    %v991 = vadd.f32 %v531, %v990
    %992 = vdwg.mxu0
    %993 = vmatprep.subr.bf16.mxu0 %v809
    %994 = vmatpush1.bf16.msra.mxu0 %v808
    %995 = vmatprep.subr.bf16.mxu0 %v813
    %996 = vmatpush1.bf16.msra.mxu0 %v812
    %997 = vmatprep.subr.bf16.mxu0 %v817
    %998 = vmatpush1.bf16.msra.mxu0 %v816
    %999 = vmatprep.subr.bf16.mxu0 %v821
    %1000 = vmatpush1.bf16.msra.mxu0 %v820
    %1001 = vmatprep.subr.bf16.mxu0 %v825
    %1002 = vmatpush1.bf16.msra.mxu0 %v824
    %1003 = vmatprep.subr.bf16.mxu0 %v829
    %1004 = vmatpush1.bf16.msra.mxu0 %v828
    %1005 = vmatprep.subr.bf16.mxu0 %v833
    %1006 = vmatpush1.bf16.msra.mxu0 %v832
    %1007 = vmatprep.subr.bf16.mxu0 %v837
    %1008 = vmatpush1.bf16.msra.mxu0 %v836
    %1009 = vmatprep.subr.bf16.mxu0 0
    %1010 = vmatpush1.bf16.msra.mxu0 0
    %1011 = vmatprep.subr.bf16.mxu0 0
    %1012 = vmatpush1.bf16.msra.mxu0 0
    %1013 = vmatprep.subr.bf16.mxu0 0
    %1014 = vmatpush1.bf16.msra.mxu0 0
    %1015 = vmatprep.subr.bf16.mxu0 0
    %1016 = vmatpush1.bf16.msra.mxu0 0
    %1017 = vmatprep.subr.bf16.mxu0 0
    %1018 = vmatpush1.bf16.msra.mxu0 0
    %1019 = vmatprep.subr.bf16.mxu0 0
    %1020 = vmatpush1.bf16.msra.mxu0 0
    %1021 = vmatprep.subr.bf16.mxu0 0
    %1022 = vmatpush1.bf16.msra.mxu0 0
    %1023 = vmatprep.subr.bf16.mxu0 0
    %1024 = vmatpush1.bf16.msra.mxu0 0
    %1025 = vmatprep.mubr.bf16.mxu0 0
    %1026 = vmatmul.mubr.bf16.gmra.mrb[0].mxu0 %v692
    %v1027 = vpop.f32.mrb[0].mxu0
    %v1028 = vadd.f32 %v568, %v1027
    %v1029 = vpop.f32.mrb[0].mxu0
    %v1030 = vadd.f32 %v570, %v1029
    %v1031 = vpop.f32.mrb[0].mxu0
    %v1032 = vadd.f32 %v572, %v1031
    %v1033 = vpop.f32.mrb[0].mxu0
    %v1034 = vadd.f32 %v574, %v1033
    %1035 = vmatprep.mubr.bf16.mxu0 0
    %1036 = vmatmul.mubr.bf16.gmra.mrb[0].mxu0 %v693
    %v1037 = vpop.f32.mrb[0].mxu0
    %v1038 = vadd.f32 %v578, %v1037
    %v1039 = vpop.f32.mrb[0].mxu0
    %v1040 = vadd.f32 %v580, %v1039
    %v1041 = vpop.f32.mrb[0].mxu0
    %v1042 = vadd.f32 %v582, %v1041
    %v1043 = vpop.f32.mrb[0].mxu0
    %v1044 = vadd.f32 %v584, %v1043
    %1045 = vmatprep.mubr.bf16.mxu0 0
    %1046 = vmatmul.mubr.bf16.gmra.mrb[0].mxu0 %v694
    %v1047 = vpop.f32.mrb[0].mxu0
    %v1048 = vadd.f32 %v588, %v1047
    %v1049 = vpop.f32.mrb[0].mxu0
    %v1050 = vadd.f32 %v590, %v1049
    %v1051 = vpop.f32.mrb[0].mxu0
    %v1052 = vadd.f32 %v592, %v1051
    %v1053 = vpop.f32.mrb[0].mxu0
    %v1054 = vadd.f32 %v594, %v1053
    %1055 = vmatprep.mubr.bf16.mxu0 0
    %1056 = vmatmul.mubr.bf16.gmra.mrb[0].mxu0 %v695
    %v1057 = vpop.f32.mrb[0].mxu0
    %v1058 = vadd.f32 %v598, %v1057
    %v1059 = vpop.f32.mrb[0].mxu0
    %v1060 = vadd.f32 %v600, %v1059
    %v1061 = vpop.f32.mrb[0].mxu0
    %v1062 = vadd.f32 %v602, %v1061
    %v1063 = vpop.f32.mrb[0].mxu0
    %v1064 = vadd.f32 %v604, %v1063
    %1065 = vmatprep.mubr.bf16.mxu0 0
    %1066 = vmatmul.mubr.bf16.gmra.mrb[0].mxu0 %v696
    %v1067 = vpop.f32.mrb[0].mxu0
    %v1068 = vadd.f32 %v608, %v1067
    %v1069 = vpop.f32.mrb[0].mxu0
    %v1070 = vadd.f32 %v610, %v1069
    %v1071 = vpop.f32.mrb[0].mxu0
    %v1072 = vadd.f32 %v612, %v1071
    %v1073 = vpop.f32.mrb[0].mxu0
    %v1074 = vadd.f32 %v614, %v1073
    %1075 = vmatprep.mubr.bf16.mxu0 0
    %1076 = vmatmul.mubr.bf16.gmra.mrb[0].mxu0 %v697
    %v1077 = vpop.f32.mrb[0].mxu0
    %v1078 = vadd.f32 %v618, %v1077
    %v1079 = vpop.f32.mrb[0].mxu0
    %v1080 = vadd.f32 %v620, %v1079
    %v1081 = vpop.f32.mrb[0].mxu0
    %v1082 = vadd.f32 %v622, %v1081
    %v1083 = vpop.f32.mrb[0].mxu0
    %v1084 = vadd.f32 %v624, %v1083
    %1085 = vmatprep.mubr.bf16.mxu0 0
    %1086 = vmatmul.mubr.bf16.gmra.mrb[0].mxu0 %v698
    %v1087 = vpop.f32.mrb[0].mxu0
    %v1088 = vadd.f32 %v628, %v1087
    %v1089 = vpop.f32.mrb[0].mxu0
    %v1090 = vadd.f32 %v630, %v1089
    %v1091 = vpop.f32.mrb[0].mxu0
    %v1092 = vadd.f32 %v632, %v1091
    %v1093 = vpop.f32.mrb[0].mxu0
    %v1094 = vadd.f32 %v634, %v1093
    %1095 = vmatprep.mubr.bf16.mxu0 0
    %1096 = vmatmul.mubr.bf16.gmra.mrb[0].mxu0 %v699
    %v1097 = vpop.f32.mrb[0].mxu0
    %v1098 = vadd.f32 %v638, %v1097
    %v1099 = vpop.f32.mrb[0].mxu0
    %v1100 = vadd.f32 %v640, %v1099
    %v1101 = vpop.f32.mrb[0].mxu0
    %v1102 = vadd.f32 %v642, %v1101
    %v1103 = vpop.f32.mrb[0].mxu0
    %v1104 = vadd.f32 %v644, %v1103
    %1105 = vmatprep.mubr.bf16.mxu0 0
    %1106 = vmatmul.mubr.bf16.gmra.mrb[0].mxu0 %v700
    %v1107 = vpop.f32.mrb[0].mxu0
    %v1108 = vadd.f32 %v648, %v1107
    %v1109 = vpop.f32.mrb[0].mxu0
    %v1110 = vadd.f32 %v650, %v1109
    %v1111 = vpop.f32.mrb[0].mxu0
    %v1112 = vadd.f32 %v652, %v1111
    %v1113 = vpop.f32.mrb[0].mxu0
    %v1114 = vadd.f32 %v654, %v1113
    %1115 = vdwg.mxu0
    %v1116 = vld [vmem:[%s4] sm:$0xf]
    %v1118 = vlaneseq
    %v1119 = vshrl.u32 %v1118, 7
    %v1120 = vsub.s32 0, %v1119
    %v1121 = vrot.slane %v1116, %v1120
    %v1122 = vlaneseq
    %v1123 = vshrl.u32 %v1122, 7
    %v1124 = vsub.s32 1, %v1123
    %v1125 = vrot.slane %v1116, %v1124
    %v1126 = vlaneseq
    %v1127 = vshrl.u32 %v1126, 7
    %v1128 = vsub.s32 2, %v1127
    %v1129 = vrot.slane %v1116, %v1128
    %v1130 = vlaneseq
    %v1131 = vshrl.u32 %v1130, 7
    %v1132 = vsub.s32 3, %v1131
    %v1133 = vrot.slane %v1116, %v1132
    %v1138 = vadd.f32 %v905, %v1121
    %v1139 = vadd.f32 %v907, %v1125
    %v1140 = vadd.f32 %v1028, %v1129
    %v1141 = vadd.f32 %v1030, %v1133
    %v1142 = vadd.f32 %v909, %v1121
    %v1143 = vadd.f32 %v911, %v1125
    %v1144 = vadd.f32 %v1032, %v1129
    %v1145 = vadd.f32 %v1034, %v1133
    %v1146 = vadd.f32 %v915, %v1121
    %v1147 = vadd.f32 %v917, %v1125
    %v1148 = vadd.f32 %v1038, %v1129
    %v1149 = vadd.f32 %v1040, %v1133
    %v1150 = vadd.f32 %v919, %v1121
    %v1151 = vadd.f32 %v921, %v1125
    %v1152 = vadd.f32 %v1042, %v1129
    %v1153 = vadd.f32 %v1044, %v1133
    %v1154 = vadd.f32 %v925, %v1121
    %v1155 = vadd.f32 %v927, %v1125
    %v1156 = vadd.f32 %v1048, %v1129
    %v1157 = vadd.f32 %v1050, %v1133
    %v1158 = vadd.f32 %v929, %v1121
    %v1159 = vadd.f32 %v931, %v1125
    %v1160 = vadd.f32 %v1052, %v1129
    %v1161 = vadd.f32 %v1054, %v1133
    %v1162 = vadd.f32 %v935, %v1121
    %v1163 = vadd.f32 %v937, %v1125
    %v1164 = vadd.f32 %v1058, %v1129
    %v1165 = vadd.f32 %v1060, %v1133
    %v1166 = vadd.f32 %v939, %v1121
    %v1167 = vadd.f32 %v941, %v1125
    %v1168 = vadd.f32 %v1062, %v1129
    %v1169 = vadd.f32 %v1064, %v1133
    %v1170 = vadd.f32 %v945, %v1121
    %v1171 = vadd.f32 %v947, %v1125
    %v1172 = vadd.f32 %v1068, %v1129
    %v1173 = vadd.f32 %v1070, %v1133
    %v1174 = vadd.f32 %v949, %v1121
    %v1175 = vadd.f32 %v951, %v1125
    %v1176 = vadd.f32 %v1072, %v1129
    %v1177 = vadd.f32 %v1074, %v1133
    %v1178 = vadd.f32 %v955, %v1121
    %v1179 = vadd.f32 %v957, %v1125
    %v1180 = vadd.f32 %v1078, %v1129
    %v1181 = vadd.f32 %v1080, %v1133
    %v1182 = vadd.f32 %v959, %v1121
    %v1183 = vadd.f32 %v961, %v1125
    %v1184 = vadd.f32 %v1082, %v1129
    %v1185 = vadd.f32 %v1084, %v1133
    %v1186 = vadd.f32 %v965, %v1121
    %v1187 = vadd.f32 %v967, %v1125
    %v1188 = vadd.f32 %v1088, %v1129
    %v1189 = vadd.f32 %v1090, %v1133
    %v1190 = vadd.f32 %v969, %v1121
    %v1191 = vadd.f32 %v971, %v1125
    %v1192 = vadd.f32 %v1092, %v1129
    %v1193 = vadd.f32 %v1094, %v1133
    %v1194 = vadd.f32 %v975, %v1121
    %v1195 = vadd.f32 %v977, %v1125
    %v1196 = vadd.f32 %v1098, %v1129
    %v1197 = vadd.f32 %v1100, %v1133
    %v1198 = vadd.f32 %v979, %v1121
    %v1199 = vadd.f32 %v981, %v1125
    %v1200 = vadd.f32 %v1102, %v1129
    %v1201 = vadd.f32 %v1104, %v1133
    %v1202 = vadd.f32 %v985, %v1121
    %v1203 = vadd.f32 %v987, %v1125
    %v1204 = vadd.f32 %v1108, %v1129
    %v1205 = vadd.f32 %v1110, %v1133
    %v1206 = vadd.f32 %v989, %v1121
    %v1207 = vadd.f32 %v991, %v1125
    %v1208 = vadd.f32 %v1112, %v1129
    %v1209 = vadd.f32 %v1114, %v1133
    %v1210 = vmul.f32 %v1138, 0.2
    %v1211 = vmul.f32 %v1139, 0.2
    %v1212 = vmul.f32 %v1140, 0.2
    %v1213 = vmul.f32 %v1141, 0.2
    %v1214 = vmul.f32 %v1142, 0.2
    %v1215 = vmul.f32 %v1143, 0.2
    %v1216 = vmul.f32 %v1144, 0.2
    %v1217 = vmul.f32 %v1145, 0.2
    %v1218 = vmul.f32 %v1146, 0.2
    %v1219 = vmul.f32 %v1147, 0.2
    %v1220 = vmul.f32 %v1148, 0.2
    %v1221 = vmul.f32 %v1149, 0.2
    %v1222 = vmul.f32 %v1150, 0.2
    %v1223 = vmul.f32 %v1151, 0.2
    %v1224 = vmul.f32 %v1152, 0.2
    %v1225 = vmul.f32 %v1153, 0.2
    %v1226 = vmul.f32 %v1154, 0.2
    %v1227 = vmul.f32 %v1155, 0.2
    %v1228 = vmul.f32 %v1156, 0.2
    %v1229 = vmul.f32 %v1157, 0.2
    %v1230 = vmul.f32 %v1158, 0.2
    %v1231 = vmul.f32 %v1159, 0.2
    %v1232 = vmul.f32 %v1160, 0.2
    %v1233 = vmul.f32 %v1161, 0.2
    %v1234 = vmul.f32 %v1162, 0.2
    %v1235 = vmul.f32 %v1163, 0.2
    %v1236 = vmul.f32 %v1164, 0.2
    %v1237 = vmul.f32 %v1165, 0.2
    %v1238 = vmul.f32 %v1166, 0.2
    %v1239 = vmul.f32 %v1167, 0.2
    %v1240 = vmul.f32 %v1168, 0.2
    %v1241 = vmul.f32 %v1169, 0.2
    %v1242 = vmul.f32 %v1170, 0.2
    %v1243 = vmul.f32 %v1171, 0.2
    %v1244 = vmul.f32 %v1172, 0.2
    %v1245 = vmul.f32 %v1173, 0.2
    %v1246 = vmul.f32 %v1174, 0.2
    %v1247 = vmul.f32 %v1175, 0.2
    %v1248 = vmul.f32 %v1176, 0.2
    %v1249 = vmul.f32 %v1177, 0.2
    %v1250 = vmul.f32 %v1178, 0.2
    %v1251 = vmul.f32 %v1179, 0.2
    %v1252 = vmul.f32 %v1180, 0.2
    %v1253 = vmul.f32 %v1181, 0.2
    %v1254 = vmul.f32 %v1182, 0.2
    %v1255 = vmul.f32 %v1183, 0.2
    %v1256 = vmul.f32 %v1184, 0.2
    %v1257 = vmul.f32 %v1185, 0.2
    %v1258 = vmul.f32 %v1186, 0.2
    %v1259 = vmul.f32 %v1187, 0.2
    %v1260 = vmul.f32 %v1188, 0.2
    %v1261 = vmul.f32 %v1189, 0.2
    %v1262 = vmul.f32 %v1190, 0.2
    %v1263 = vmul.f32 %v1191, 0.2
    %v1264 = vmul.f32 %v1192, 0.2
    %v1265 = vmul.f32 %v1193, 0.2
    %v1266 = vmul.f32 %v1194, 0.2
    %v1267 = vmul.f32 %v1195, 0.2
    %v1268 = vmul.f32 %v1196, 0.2
    %v1269 = vmul.f32 %v1197, 0.2
    %v1270 = vmul.f32 %v1198, 0.2
    %v1271 = vmul.f32 %v1199, 0.2
    %v1272 = vmul.f32 %v1200, 0.2
    %v1273 = vmul.f32 %v1201, 0.2
    %v1274 = vmul.f32 %v1202, 0.2
    %v1275 = vmul.f32 %v1203, 0.2
    %v1276 = vmul.f32 %v1204, 0.2
    %v1277 = vmul.f32 %v1205, 0.2
    %v1278 = vmul.f32 %v1206, 0.2
    %v1279 = vmul.f32 %v1207, 0.2
    %v1280 = vmul.f32 %v1208, 0.2
    %v1281 = vmul.f32 %v1209, 0.2
    %v1282 = vmax.f32 %v1138, %v1210
    %v1283 = vmax.f32 %v1139, %v1211
    %v1284 = vmax.f32 %v1140, %v1212
    %v1285 = vmax.f32 %v1141, %v1213
    %v1286 = vmax.f32 %v1142, %v1214
    %v1287 = vmax.f32 %v1143, %v1215
    %v1288 = vmax.f32 %v1144, %v1216
    %v1289 = vmax.f32 %v1145, %v1217
    %v1290 = vmax.f32 %v1146, %v1218
    %v1291 = vmax.f32 %v1147, %v1219
    %v1292 = vmax.f32 %v1148, %v1220
    %v1293 = vmax.f32 %v1149, %v1221
    %v1294 = vmax.f32 %v1150, %v1222
    %v1295 = vmax.f32 %v1151, %v1223
    %v1296 = vmax.f32 %v1152, %v1224
    %v1297 = vmax.f32 %v1153, %v1225
    %v1298 = vmax.f32 %v1154, %v1226
    %v1299 = vmax.f32 %v1155, %v1227
    %v1300 = vmax.f32 %v1156, %v1228
    %v1301 = vmax.f32 %v1157, %v1229
    %v1302 = vmax.f32 %v1158, %v1230
    %v1303 = vmax.f32 %v1159, %v1231
    %v1304 = vmax.f32 %v1160, %v1232
    %v1305 = vmax.f32 %v1161, %v1233
    %v1306 = vmax.f32 %v1162, %v1234
    %v1307 = vmax.f32 %v1163, %v1235
    %v1308 = vmax.f32 %v1164, %v1236
    %v1309 = vmax.f32 %v1165, %v1237
    %v1310 = vmax.f32 %v1166, %v1238
    %v1311 = vmax.f32 %v1167, %v1239
    %v1312 = vmax.f32 %v1168, %v1240
    %v1313 = vmax.f32 %v1169, %v1241
    %v1314 = vmax.f32 %v1170, %v1242
    %v1315 = vmax.f32 %v1171, %v1243
    %v1316 = vmax.f32 %v1172, %v1244
    %v1317 = vmax.f32 %v1173, %v1245
    %v1318 = vmax.f32 %v1174, %v1246
    %v1319 = vmax.f32 %v1175, %v1247
    %v1320 = vmax.f32 %v1176, %v1248
    %v1321 = vmax.f32 %v1177, %v1249
    %v1322 = vmax.f32 %v1178, %v1250
    %v1323 = vmax.f32 %v1179, %v1251
    %v1324 = vmax.f32 %v1180, %v1252
    %v1325 = vmax.f32 %v1181, %v1253
    %v1326 = vmax.f32 %v1182, %v1254
    %v1327 = vmax.f32 %v1183, %v1255
    %v1328 = vmax.f32 %v1184, %v1256
    %v1329 = vmax.f32 %v1185, %v1257
    %v1330 = vmax.f32 %v1186, %v1258
    %v1331 = vmax.f32 %v1187, %v1259
    %v1332 = vmax.f32 %v1188, %v1260
    %v1333 = vmax.f32 %v1189, %v1261
    %v1334 = vmax.f32 %v1190, %v1262
    %v1335 = vmax.f32 %v1191, %v1263
    %v1336 = vmax.f32 %v1192, %v1264
    %v1337 = vmax.f32 %v1193, %v1265
    %v1338 = vmax.f32 %v1194, %v1266
    %v1339 = vmax.f32 %v1195, %v1267
    %v1340 = vmax.f32 %v1196, %v1268
    %v1341 = vmax.f32 %v1197, %v1269
    %v1342 = vmax.f32 %v1198, %v1270
    %v1343 = vmax.f32 %v1199, %v1271
    %v1344 = vmax.f32 %v1200, %v1272
    %v1345 = vmax.f32 %v1201, %v1273
    %v1346 = vmax.f32 %v1202, %v1274
    %v1347 = vmax.f32 %v1203, %v1275
    %v1348 = vmax.f32 %v1204, %v1276
    %v1349 = vmax.f32 %v1205, %v1277
    %v1350 = vmax.f32 %v1206, %v1278
    %v1351 = vmax.f32 %v1207, %v1279
    %v1352 = vmax.f32 %v1208, %v1280
    %v1353 = vmax.f32 %v1209, %v1281
    %v1354 = vpack.c.bf16 %v1286, %v1282
    %v1355 = vpack.c.bf16 %v1287, %v1283
    %v1356 = vpack.c.bf16 %v1288, %v1284
    %v1357 = vpack.c.bf16 %v1289, %v1285
    %v1358 = vpack.c.bf16 %v1294, %v1290
    %v1359 = vpack.c.bf16 %v1295, %v1291
    %v1360 = vpack.c.bf16 %v1296, %v1292
    %v1361 = vpack.c.bf16 %v1297, %v1293
    %v1362 = vpack.c.bf16 %v1302, %v1298
    %v1363 = vpack.c.bf16 %v1303, %v1299
    %v1364 = vpack.c.bf16 %v1304, %v1300
    %v1365 = vpack.c.bf16 %v1305, %v1301
    %v1366 = vpack.c.bf16 %v1310, %v1306
    %v1367 = vpack.c.bf16 %v1311, %v1307
    %v1368 = vpack.c.bf16 %v1312, %v1308
    %v1369 = vpack.c.bf16 %v1313, %v1309
    %v1370 = vpack.c.bf16 %v1318, %v1314
    %v1371 = vpack.c.bf16 %v1319, %v1315
    %v1372 = vpack.c.bf16 %v1320, %v1316
    %v1373 = vpack.c.bf16 %v1321, %v1317
    %v1374 = vpack.c.bf16 %v1326, %v1322
    %v1375 = vpack.c.bf16 %v1327, %v1323
    %v1376 = vpack.c.bf16 %v1328, %v1324
    %v1377 = vpack.c.bf16 %v1329, %v1325
    %v1378 = vpack.c.bf16 %v1334, %v1330
    %v1379 = vpack.c.bf16 %v1335, %v1331
    %v1380 = vpack.c.bf16 %v1336, %v1332
    %v1381 = vpack.c.bf16 %v1337, %v1333
    %v1382 = vpack.c.bf16 %v1342, %v1338
    %v1383 = vpack.c.bf16 %v1343, %v1339
    %v1384 = vpack.c.bf16 %v1344, %v1340
    %v1385 = vpack.c.bf16 %v1345, %v1341
    %v1386 = vpack.c.bf16 %v1350, %v1346
    %v1387 = vpack.c.bf16 %v1351, %v1347
    %v1388 = vpack.c.bf16 %v1352, %v1348
    %v1389 = vpack.c.bf16 %v1353, %v1349
    %v1390 = vld [vmem:[#allocation10] sm:$0xff]
    %v1391 = vld [vmem:[#allocation10 + $0x8] sm:$0xf]
    %v1392 = vld [vmem:[#allocation10 + $0xc] sm:$0xff]
    %v1393 = vld [vmem:[#allocation10 + $0x14] sm:$0xf]
    %v1394 = vld [vmem:[#allocation10 + $0x18] sm:$0xff]
    %v1395 = vld [vmem:[#allocation10 + $0x20] sm:$0xf]
    %v1396 = vld [vmem:[#allocation10 + $0x24] sm:$0xff]
    %v1397 = vld [vmem:[#allocation10 + $0x2c] sm:$0xf]
    %v1398 = vld [vmem:[#allocation10 + $0x30] sm:$0xff]
    %v1399 = vld [vmem:[#allocation10 + $0x38] sm:$0xf]
    %v1400 = vld [vmem:[#allocation10 + $0x3c] sm:$0xff]
    %v1401 = vld [vmem:[#allocation10 + $0x44] sm:$0xf]
    %v1402 = vld [vmem:[#allocation10 + $0x48] sm:$0xff]
    %v1403 = vld [vmem:[#allocation10 + $0x50] sm:$0xf]
    %v1404 = vld [vmem:[#allocation10 + $0x54] sm:$0xff]
    %v1405 = vld [vmem:[#allocation10 + $0x5c] sm:$0xf]
    %v1406 = vld [vmem:[#allocation10 + $0x60] sm:$0xff]
    %v1407 = vld [vmem:[#allocation10 + $0x68] sm:$0xf]
    %v1408 = vld [vmem:[#allocation10 + $0x6c] sm:$0xff]
    %v1409 = vld [vmem:[#allocation10 + $0x74] sm:$0xf]
    %v1410 = vld [vmem:[#allocation10 + $0x78] sm:$0xff]
    %v1411 = vld [vmem:[#allocation10 + $0x80] sm:$0xf]
    %v1412 = vld [vmem:[#allocation10 + $0x84] sm:$0xff]
    %v1413 = vld [vmem:[#allocation10 + $0x8c] sm:$0xf]
    %v1414 = vld [vmem:[#allocation10 + $0x90] sm:$0xff]
    %v1415 = vld [vmem:[#allocation10 + $0x98] sm:$0xf]
    %v1416 = vld [vmem:[#allocation10 + $0x9c] sm:$0xff]
    %v1417 = vld [vmem:[#allocation10 + $0xa4] sm:$0xf]
    %v1418 = vld [vmem:[#allocation10 + $0xa8] sm:$0xff]
    %v1419 = vld [vmem:[#allocation10 + $0xb0] sm:$0xf]
    %v1420 = vld [vmem:[#allocation10 + $0xb4] sm:$0xff]
    %v1421 = vld [vmem:[#allocation10 + $0xbc] sm:$0xf]
    %v1422 = vld [vmem:[#allocation10 + $0xc0] sm:$0xff]
    %v1423 = vld [vmem:[#allocation10 + $0xc8] sm:$0xf]
    %v1424 = vld [vmem:[#allocation10 + $0xcc] sm:$0xff]
    %v1425 = vld [vmem:[#allocation10 + $0xd4] sm:$0xf]
    %v1426 = vld [vmem:[#allocation10 + $0xd8] sm:$0xff]
    %v1427 = vld [vmem:[#allocation10 + $0xe0] sm:$0xf]
    %v1428 = vld [vmem:[#allocation10 + $0xe4] sm:$0xff]
    %v1429 = vld [vmem:[#allocation10 + $0xec] sm:$0xf]
    %v1430 = vld [vmem:[#allocation10 + $0xf0] sm:$0xff]
    %v1431 = vld [vmem:[#allocation10 + $0xf8] sm:$0xf]
    %v1432 = vld [vmem:[#allocation10 + $0xfc] sm:$0xff]
    %v1433 = vld [vmem:[#allocation10 + $0x104] sm:$0xf]
    %v1434 = vld [vmem:[#allocation10 + $0x108] sm:$0xff]
    %v1435 = vld [vmem:[#allocation10 + $0x110] sm:$0xf]
    %v1436 = vld [vmem:[#allocation10 + $0x114] sm:$0xff]
    %v1437 = vld [vmem:[#allocation10 + $0x11c] sm:$0xf]
    %v1438 = vld [vmem:[#allocation10 + $0x120] sm:$0xff]
    %v1439 = vld [vmem:[#allocation10 + $0x128] sm:$0xf]
    %v1440 = vld [vmem:[#allocation10 + $0x12c] sm:$0xff]
    %v1441 = vld [vmem:[#allocation10 + $0x134] sm:$0xf]
    %v1442 = vld [vmem:[#allocation10 + $0x138] sm:$0xff]
    %v1443 = vld [vmem:[#allocation10 + $0x140] sm:$0xf]
    %v1444 = vld [vmem:[#allocation10 + $0x144] sm:$0xff]
    %v1445 = vld [vmem:[#allocation10 + $0x14c] sm:$0xf]
    %v1446 = vld [vmem:[#allocation10 + $0x150] sm:$0xff]
    %v1447 = vld [vmem:[#allocation10 + $0x158] sm:$0xf]
    %v1448 = vld [vmem:[#allocation10 + $0x15c] sm:$0xff]
    %v1449 = vld [vmem:[#allocation10 + $0x164] sm:$0xf]
    %v1450 = vld [vmem:[#allocation10 + $0x168] sm:$0xff]
    %v1451 = vld [vmem:[#allocation10 + $0x170] sm:$0xf]
    %v1452 = vld [vmem:[#allocation10 + $0x174] sm:$0xff]
    %v1453 = vld [vmem:[#allocation10 + $0x17c] sm:$0xf]
    %v1454 = vld [vmem:[#allocation10 + $0x180] sm:$0xff]
    %v1455 = vld [vmem:[#allocation10 + $0x188] sm:$0xf]
    %v1456 = vld [vmem:[#allocation10 + $0x18c] sm:$0xff]
    %v1457 = vld [vmem:[#allocation10 + $0x194] sm:$0xf]
    %v1458 = vld [vmem:[#allocation10 + $0x198] sm:$0xff]
    %v1459 = vld [vmem:[#allocation10 + $0x1a0] sm:$0xf]
    %v1460 = vld [vmem:[#allocation10 + $0x1a4] sm:$0xff]
    %v1461 = vld [vmem:[#allocation10 + $0x1ac] sm:$0xf]
    %v1462 = vld [vmem:[#allocation10 + $0x1b0] sm:$0xff]
    %v1463 = vld [vmem:[#allocation10 + $0x1b8] sm:$0xf]
    %v1464 = vld [vmem:[#allocation10 + $0x1bc] sm:$0xff]
    %v1465 = vld [vmem:[#allocation10 + $0x1c4] sm:$0xf]
    %v1466 = vld [vmem:[#allocation10 + $0x1c8] sm:$0xff]
    %v1467 = vld [vmem:[#allocation10 + $0x1d0] sm:$0xf]
    %v1468 = vld [vmem:[#allocation10 + $0x1d4] sm:$0xff]
    %v1469 = vld [vmem:[#allocation10 + $0x1dc] sm:$0xf]
    %v1470 = vld [vmem:[#allocation10 + $0x1e0] sm:$0xff]
    %v1471 = vld [vmem:[#allocation10 + $0x1e8] sm:$0xf]
    %v1472 = vld [vmem:[#allocation10 + $0x1ec] sm:$0xff]
    %v1473 = vld [vmem:[#allocation10 + $0x1f4] sm:$0xf]
    %v1474 = vld [vmem:[#allocation10 + $0x1f8] sm:$0xff]
    %v1475 = vld [vmem:[#allocation10 + $0x200] sm:$0xf]
    %v1476 = vld [vmem:[#allocation10 + $0x204] sm:$0xff]
    %v1477 = vld [vmem:[#allocation10 + $0x20c] sm:$0xf]
    %v1478 = vld [vmem:[#allocation10 + $0x210] sm:$0xff]
    %v1479 = vld [vmem:[#allocation10 + $0x218] sm:$0xf]
    %v1480 = vld [vmem:[#allocation10 + $0x21c] sm:$0xff]
    %v1481 = vld [vmem:[#allocation10 + $0x224] sm:$0xf]
    %v1482 = vld [vmem:[#allocation10 + $0x228] sm:$0xff]
    %v1483 = vld [vmem:[#allocation10 + $0x230] sm:$0xf]
    %v1484 = vld [vmem:[#allocation10 + $0x234] sm:$0xff]
    %v1485 = vld [vmem:[#allocation10 + $0x23c] sm:$0xf]
    %v1486 = vld [vmem:[#allocation10 + $0x240] sm:$0xff]
    %v1487 = vld [vmem:[#allocation10 + $0x248] sm:$0xf]
    %v1488 = vld [vmem:[#allocation10 + $0x24c] sm:$0xff]
    %v1489 = vld [vmem:[#allocation10 + $0x254] sm:$0xf]
    %v1490 = vld [vmem:[#allocation10 + $0x258] sm:$0xff]
    %v1491 = vld [vmem:[#allocation10 + $0x260] sm:$0xf]
    %v1492 = vld [vmem:[#allocation10 + $0x264] sm:$0xff]
    %v1493 = vld [vmem:[#allocation10 + $0x26c] sm:$0xf]
    %v1494 = vld [vmem:[#allocation10 + $0x270] sm:$0xff]
    %v1495 = vld [vmem:[#allocation10 + $0x278] sm:$0xf]
    %v1496 = vld [vmem:[#allocation10 + $0x27c] sm:$0xff]
    %v1497 = vld [vmem:[#allocation10 + $0x284] sm:$0xf]
    %v1498 = vld [vmem:[#allocation10 + $0x288] sm:$0xff]
    %v1499 = vld [vmem:[#allocation10 + $0x290] sm:$0xf]
    %v1500 = vld [vmem:[#allocation10 + $0x294] sm:$0xff]
    %v1501 = vld [vmem:[#allocation10 + $0x29c] sm:$0xf]
    %v1502 = vld [vmem:[#allocation10 + $0x2a0] sm:$0xff]
    %v1503 = vld [vmem:[#allocation10 + $0x2a8] sm:$0xf]
    %v1504 = vld [vmem:[#allocation10 + $0x2ac] sm:$0xff]
    %v1505 = vld [vmem:[#allocation10 + $0x2b4] sm:$0xf]
    %v1506 = vld [vmem:[#allocation10 + $0x2b8] sm:$0xff]
    %v1507 = vld [vmem:[#allocation10 + $0x2c0] sm:$0xf]
    %v1508 = vld [vmem:[#allocation10 + $0x2c4] sm:$0xff]
    %v1509 = vld [vmem:[#allocation10 + $0x2cc] sm:$0xf]
    %v1510 = vld [vmem:[#allocation10 + $0x2d0] sm:$0xff]
    %v1511 = vld [vmem:[#allocation10 + $0x2d8] sm:$0xf]
    %v1512 = vld [vmem:[#allocation10 + $0x2dc] sm:$0xff]
    %v1513 = vld [vmem:[#allocation10 + $0x2e4] sm:$0xf]
    %v1514 = vld [vmem:[#allocation10 + $0x2e8] sm:$0xff]
    %v1515 = vld [vmem:[#allocation10 + $0x2f0] sm:$0xf]
    %v1516 = vld [vmem:[#allocation10 + $0x2f4] sm:$0xff]
    %v1517 = vld [vmem:[#allocation10 + $0x2fc] sm:$0xf]
    %v1518 = vld [vmem:[%s6] sm:$0x7]
    %v1520 = vlaneseq
    %v1521 = vshrl.u32 %v1520, 7
    %v1522 = vsub.s32 0, %v1521
    %v1523 = vrot.slane %v1518, %v1522
    %v1524 = vlaneseq
    %v1525 = vshrl.u32 %v1524, 7
    %v1526 = vsub.s32 1, %v1525
    %v1527 = vrot.slane %v1518, %v1526
    %v1528 = vlaneseq
    %v1529 = vshrl.u32 %v1528, 7
    %v1530 = vsub.s32 2, %v1529
    %v1531 = vrot.slane %v1518, %v1530
    %v1663 = vunpack.c.l.b16 %v1390
    %v1664 = vunpack.c.h.b16 %v1390
    %v1665 = vunpack.c.l.b16 %v1391
    %v1666 = vunpack.c.l.b16 %v1392
    %v1667 = vunpack.c.h.b16 %v1392
    %v1668 = vunpack.c.l.b16 %v1393
    %v1669 = vunpack.c.l.b16 %v1394
    %v1670 = vunpack.c.h.b16 %v1394
    %v1671 = vunpack.c.l.b16 %v1395
    %v1672 = vunpack.c.l.b16 %v1396
    %v1673 = vunpack.c.h.b16 %v1396
    %v1674 = vunpack.c.l.b16 %v1397
    %v1675 = vunpack.c.l.b16 %v1398
    %v1676 = vunpack.c.h.b16 %v1398
    %v1677 = vunpack.c.l.b16 %v1399
    %v1678 = vunpack.c.l.b16 %v1400
    %v1679 = vunpack.c.h.b16 %v1400
    %v1680 = vunpack.c.l.b16 %v1401
    %v1681 = vunpack.c.l.b16 %v1402
    %v1682 = vunpack.c.h.b16 %v1402
    %v1683 = vunpack.c.l.b16 %v1403
    %v1684 = vunpack.c.l.b16 %v1404
    %v1685 = vunpack.c.h.b16 %v1404
    %v1686 = vunpack.c.l.b16 %v1405
    %v1687 = vunpack.c.l.b16 %v1406
    %v1688 = vunpack.c.h.b16 %v1406
    %v1689 = vunpack.c.l.b16 %v1407
    %v1690 = vunpack.c.l.b16 %v1408
    %v1691 = vunpack.c.h.b16 %v1408
    %v1692 = vunpack.c.l.b16 %v1409
    %v1693 = vunpack.c.l.b16 %v1410
    %v1694 = vunpack.c.h.b16 %v1410
    %v1695 = vunpack.c.l.b16 %v1411
    %v1696 = vunpack.c.l.b16 %v1412
    %v1697 = vunpack.c.h.b16 %v1412
    %v1698 = vunpack.c.l.b16 %v1413
    %v1699 = vunpack.c.l.b16 %v1414
    %v1700 = vunpack.c.h.b16 %v1414
    %v1701 = vunpack.c.l.b16 %v1415
    %v1702 = vunpack.c.l.b16 %v1416
    %v1703 = vunpack.c.h.b16 %v1416
    %v1704 = vunpack.c.l.b16 %v1417
    %v1705 = vunpack.c.l.b16 %v1418
    %v1706 = vunpack.c.h.b16 %v1418
    %v1707 = vunpack.c.l.b16 %v1419
    %v1708 = vunpack.c.l.b16 %v1420
    %v1709 = vunpack.c.h.b16 %v1420
    %v1710 = vunpack.c.l.b16 %v1421
    %v1711 = vunpack.c.l.b16 %v1422
    %v1712 = vunpack.c.h.b16 %v1422
    %v1713 = vunpack.c.l.b16 %v1423
    %v1714 = vunpack.c.l.b16 %v1424
    %v1715 = vunpack.c.h.b16 %v1424
    %v1716 = vunpack.c.l.b16 %v1425
    %v1717 = vunpack.c.l.b16 %v1426
    %v1718 = vunpack.c.h.b16 %v1426
    %v1719 = vunpack.c.l.b16 %v1427
    %v1720 = vunpack.c.l.b16 %v1428
    %v1721 = vunpack.c.h.b16 %v1428
    %v1722 = vunpack.c.l.b16 %v1429
    %v1723 = vunpack.c.l.b16 %v1430
    %v1724 = vunpack.c.h.b16 %v1430
    %v1725 = vunpack.c.l.b16 %v1431
    %v1726 = vunpack.c.l.b16 %v1432
    %v1727 = vunpack.c.h.b16 %v1432
    %v1728 = vunpack.c.l.b16 %v1433
    %v1729 = vunpack.c.l.b16 %v1434
    %v1730 = vunpack.c.h.b16 %v1434
    %v1731 = vunpack.c.l.b16 %v1435
    %v1732 = vunpack.c.l.b16 %v1436
    %v1733 = vunpack.c.h.b16 %v1436
    %v1734 = vunpack.c.l.b16 %v1437
    %v1735 = vunpack.c.l.b16 %v1438
    %v1736 = vunpack.c.h.b16 %v1438
    %v1737 = vunpack.c.l.b16 %v1439
    %v1738 = vunpack.c.l.b16 %v1440
    %v1739 = vunpack.c.h.b16 %v1440
    %v1740 = vunpack.c.l.b16 %v1441
    %v1741 = vunpack.c.l.b16 %v1442
    %v1742 = vunpack.c.h.b16 %v1442
    %v1743 = vunpack.c.l.b16 %v1443
    %v1744 = vunpack.c.l.b16 %v1444
    %v1745 = vunpack.c.h.b16 %v1444
    %v1746 = vunpack.c.l.b16 %v1445
    %v1747 = vunpack.c.l.b16 %v1446
    %v1748 = vunpack.c.h.b16 %v1446
    %v1749 = vunpack.c.l.b16 %v1447
    %v1750 = vunpack.c.l.b16 %v1448
    %v1751 = vunpack.c.h.b16 %v1448
    %v1752 = vunpack.c.l.b16 %v1449
    %v1753 = vunpack.c.l.b16 %v1450
    %v1754 = vunpack.c.h.b16 %v1450
    %v1755 = vunpack.c.l.b16 %v1451
    %v1756 = vunpack.c.l.b16 %v1452
    %v1757 = vunpack.c.h.b16 %v1452
    %v1758 = vunpack.c.l.b16 %v1453
    %v1759 = vunpack.c.l.b16 %v1454
    %v1760 = vunpack.c.h.b16 %v1454
    %v1761 = vunpack.c.l.b16 %v1455
    %v1762 = vunpack.c.l.b16 %v1456
    %v1763 = vunpack.c.h.b16 %v1456
    %v1764 = vunpack.c.l.b16 %v1457
    %v1765 = vunpack.c.l.b16 %v1458
    %v1766 = vunpack.c.h.b16 %v1458
    %v1767 = vunpack.c.l.b16 %v1459
    %v1768 = vunpack.c.l.b16 %v1460
    %v1769 = vunpack.c.h.b16 %v1460
    %v1770 = vunpack.c.l.b16 %v1461
    %v1771 = vunpack.c.l.b16 %v1462
    %v1772 = vunpack.c.h.b16 %v1462
    %v1773 = vunpack.c.l.b16 %v1463
    %v1774 = vunpack.c.l.b16 %v1464
    %v1775 = vunpack.c.h.b16 %v1464
    %v1776 = vunpack.c.l.b16 %v1465
    %v1777 = vunpack.c.l.b16 %v1466
    %v1778 = vunpack.c.h.b16 %v1466
    %v1779 = vunpack.c.l.b16 %v1467
    %v1780 = vunpack.c.l.b16 %v1468
    %v1781 = vunpack.c.h.b16 %v1468
    %v1782 = vunpack.c.l.b16 %v1469
    %v1783 = vunpack.c.l.b16 %v1470
    %v1784 = vunpack.c.h.b16 %v1470
    %v1785 = vunpack.c.l.b16 %v1471
    %v1786 = vunpack.c.l.b16 %v1472
    %v1787 = vunpack.c.h.b16 %v1472
    %v1788 = vunpack.c.l.b16 %v1473
    %v1789 = vunpack.c.l.b16 %v1474
    %v1790 = vunpack.c.h.b16 %v1474
    %v1791 = vunpack.c.l.b16 %v1475
    %v1792 = vunpack.c.l.b16 %v1476
    %v1793 = vunpack.c.h.b16 %v1476
    %v1794 = vunpack.c.l.b16 %v1477
    %v1795 = vunpack.c.l.b16 %v1478
    %v1796 = vunpack.c.h.b16 %v1478
    %v1797 = vunpack.c.l.b16 %v1479
    %v1798 = vunpack.c.l.b16 %v1480
    %v1799 = vunpack.c.h.b16 %v1480
    %v1800 = vunpack.c.l.b16 %v1481
    %v1801 = vunpack.c.l.b16 %v1482
    %v1802 = vunpack.c.h.b16 %v1482
    %v1803 = vunpack.c.l.b16 %v1483
    %v1804 = vunpack.c.l.b16 %v1484
    %v1805 = vunpack.c.h.b16 %v1484
    %v1806 = vunpack.c.l.b16 %v1485
    %v1807 = vunpack.c.l.b16 %v1486
    %v1808 = vunpack.c.h.b16 %v1486
    %v1809 = vunpack.c.l.b16 %v1487
    %v1810 = vunpack.c.l.b16 %v1488
    %v1811 = vunpack.c.h.b16 %v1488
    %v1812 = vunpack.c.l.b16 %v1489
    %v1813 = vunpack.c.l.b16 %v1490
    %v1814 = vunpack.c.h.b16 %v1490
    %v1815 = vunpack.c.l.b16 %v1491
    %v1816 = vunpack.c.l.b16 %v1492
    %v1817 = vunpack.c.h.b16 %v1492
    %v1818 = vunpack.c.l.b16 %v1493
    %v1819 = vunpack.c.l.b16 %v1494
    %v1820 = vunpack.c.h.b16 %v1494
    %v1821 = vunpack.c.l.b16 %v1495
    %v1822 = vunpack.c.l.b16 %v1496
    %v1823 = vunpack.c.h.b16 %v1496
    %v1824 = vunpack.c.l.b16 %v1497
    %v1825 = vunpack.c.l.b16 %v1498
    %v1826 = vunpack.c.h.b16 %v1498
    %v1827 = vunpack.c.l.b16 %v1499
    %v1828 = vunpack.c.l.b16 %v1500
    %v1829 = vunpack.c.h.b16 %v1500
    %v1830 = vunpack.c.l.b16 %v1501
    %v1831 = vunpack.c.l.b16 %v1502
    %v1832 = vunpack.c.h.b16 %v1502
    %v1833 = vunpack.c.l.b16 %v1503
    %v1834 = vunpack.c.l.b16 %v1504
    %v1835 = vunpack.c.h.b16 %v1504
    %v1836 = vunpack.c.l.b16 %v1505
    %v1837 = vunpack.c.l.b16 %v1506
    %v1838 = vunpack.c.h.b16 %v1506
    %v1839 = vunpack.c.l.b16 %v1507
    %v1840 = vunpack.c.l.b16 %v1508
    %v1841 = vunpack.c.h.b16 %v1508
    %v1842 = vunpack.c.l.b16 %v1509
    %v1843 = vunpack.c.l.b16 %v1510
    %v1844 = vunpack.c.h.b16 %v1510
    %v1845 = vunpack.c.l.b16 %v1511
    %v1846 = vunpack.c.l.b16 %v1512
    %v1847 = vunpack.c.h.b16 %v1512
    %v1848 = vunpack.c.l.b16 %v1513
    %v1849 = vunpack.c.l.b16 %v1514
    %v1850 = vunpack.c.h.b16 %v1514
    %v1851 = vunpack.c.l.b16 %v1515
    %v1852 = vunpack.c.l.b16 %v1516
    %v1853 = vunpack.c.h.b16 %v1516
    %v1854 = vunpack.c.l.b16 %v1517
    %v1855 = vpack.c.b16 %v1666, %v1663
    %v1856 = vpack.c.b16 %v1667, %v1664
    %v1857 = vpack.c.b16 %v1668, %v1665
    %v1858 = vpack.c.b16 %v1672, %v1669
    %v1859 = vpack.c.b16 %v1673, %v1670
    %v1860 = vpack.c.b16 %v1674, %v1671
    %v1861 = vpack.c.b16 %v1678, %v1675
    %v1862 = vpack.c.b16 %v1679, %v1676
    %v1863 = vpack.c.b16 %v1680, %v1677
    %v1864 = vpack.c.b16 %v1684, %v1681
    %v1865 = vpack.c.b16 %v1685, %v1682
    %v1866 = vpack.c.b16 %v1686, %v1683
    %v1867 = vpack.c.b16 %v1690, %v1687
    %v1868 = vpack.c.b16 %v1691, %v1688
    %v1869 = vpack.c.b16 %v1692, %v1689
    %v1870 = vpack.c.b16 %v1696, %v1693
    %v1871 = vpack.c.b16 %v1697, %v1694
    %v1872 = vpack.c.b16 %v1698, %v1695
    %v1873 = vpack.c.b16 %v1702, %v1699
    %v1874 = vpack.c.b16 %v1703, %v1700
    %v1875 = vpack.c.b16 %v1704, %v1701
    %v1876 = vpack.c.b16 %v1708, %v1705
    %v1877 = vpack.c.b16 %v1709, %v1706
    %v1878 = vpack.c.b16 %v1710, %v1707
    %v1879 = vpack.c.b16 %v1714, %v1711
    %v1880 = vpack.c.b16 %v1715, %v1712
    %v1881 = vpack.c.b16 %v1716, %v1713
    %v1882 = vpack.c.b16 %v1720, %v1717
    %v1883 = vpack.c.b16 %v1721, %v1718
    %v1884 = vpack.c.b16 %v1722, %v1719
    %v1885 = vpack.c.b16 %v1726, %v1723
    %v1886 = vpack.c.b16 %v1727, %v1724
    %v1887 = vpack.c.b16 %v1728, %v1725
    %v1888 = vpack.c.b16 %v1732, %v1729
    %v1889 = vpack.c.b16 %v1733, %v1730
    %v1890 = vpack.c.b16 %v1734, %v1731
    %v1891 = vpack.c.b16 %v1738, %v1735
    %v1892 = vpack.c.b16 %v1739, %v1736
    %v1893 = vpack.c.b16 %v1740, %v1737
    %v1894 = vpack.c.b16 %v1744, %v1741
    %v1895 = vpack.c.b16 %v1745, %v1742
    %v1896 = vpack.c.b16 %v1746, %v1743
    %v1897 = vpack.c.b16 %v1750, %v1747
    %v1898 = vpack.c.b16 %v1751, %v1748
    %v1899 = vpack.c.b16 %v1752, %v1749
    %v1900 = vpack.c.b16 %v1756, %v1753
    %v1901 = vpack.c.b16 %v1757, %v1754
    %v1902 = vpack.c.b16 %v1758, %v1755
    %v1903 = vpack.c.b16 %v1762, %v1759
    %v1904 = vpack.c.b16 %v1763, %v1760
    %v1905 = vpack.c.b16 %v1764, %v1761
    %v1906 = vpack.c.b16 %v1768, %v1765
    %v1907 = vpack.c.b16 %v1769, %v1766
    %v1908 = vpack.c.b16 %v1770, %v1767
    %v1909 = vpack.c.b16 %v1774, %v1771
    %v1910 = vpack.c.b16 %v1775, %v1772
    %v1911 = vpack.c.b16 %v1776, %v1773
    %v1912 = vpack.c.b16 %v1780, %v1777
    %v1913 = vpack.c.b16 %v1781, %v1778
    %v1914 = vpack.c.b16 %v1782, %v1779
    %v1915 = vpack.c.b16 %v1786, %v1783
    %v1916 = vpack.c.b16 %v1787, %v1784
    %v1917 = vpack.c.b16 %v1788, %v1785
    %v1918 = vpack.c.b16 %v1792, %v1789
    %v1919 = vpack.c.b16 %v1793, %v1790
    %v1920 = vpack.c.b16 %v1794, %v1791
    %v1921 = vpack.c.b16 %v1798, %v1795
    %v1922 = vpack.c.b16 %v1799, %v1796
    %v1923 = vpack.c.b16 %v1800, %v1797
    %v1924 = vpack.c.b16 %v1804, %v1801
    %v1925 = vpack.c.b16 %v1805, %v1802
    %v1926 = vpack.c.b16 %v1806, %v1803
    %v1927 = vpack.c.b16 %v1810, %v1807
    %v1928 = vpack.c.b16 %v1811, %v1808
    %v1929 = vpack.c.b16 %v1812, %v1809
    %v1930 = vpack.c.b16 %v1816, %v1813
    %v1931 = vpack.c.b16 %v1817, %v1814
    %v1932 = vpack.c.b16 %v1818, %v1815
    %v1933 = vpack.c.b16 %v1822, %v1819
    %v1934 = vpack.c.b16 %v1823, %v1820
    %v1935 = vpack.c.b16 %v1824, %v1821
    %v1936 = vpack.c.b16 %v1828, %v1825
    %v1937 = vpack.c.b16 %v1829, %v1826
    %v1938 = vpack.c.b16 %v1830, %v1827
    %v1939 = vpack.c.b16 %v1834, %v1831
    %v1940 = vpack.c.b16 %v1835, %v1832
    %v1941 = vpack.c.b16 %v1836, %v1833
    %v1942 = vpack.c.b16 %v1840, %v1837
    %v1943 = vpack.c.b16 %v1841, %v1838
    %v1944 = vpack.c.b16 %v1842, %v1839
    %v1945 = vpack.c.b16 %v1846, %v1843
    %v1946 = vpack.c.b16 %v1847, %v1844
    %v1947 = vpack.c.b16 %v1848, %v1845
    %v1948 = vpack.c.b16 %v1852, %v1849
    %v1949 = vpack.c.b16 %v1853, %v1850
    %v1950 = vpack.c.b16 %v1854, %v1851
    %2047 = vmatprep.subr.bf16.mxu0 %v1856
    %2048 = vmatpush1.bf16.msra.mxu0 %v1855
    %2049 = vmatprep.subr.bf16.mxu0 %v1859
    %2050 = vmatpush1.bf16.msra.mxu0 %v1858
    %2051 = vmatprep.subr.bf16.mxu0 %v1862
    %2052 = vmatpush1.bf16.msra.mxu0 %v1861
    %2053 = vmatprep.subr.bf16.mxu0 %v1865
    %2054 = vmatpush1.bf16.msra.mxu0 %v1864
    %2055 = vmatprep.subr.bf16.mxu0 %v1868
    %2056 = vmatpush1.bf16.msra.mxu0 %v1867
    %2057 = vmatprep.subr.bf16.mxu0 %v1871
    %2058 = vmatpush1.bf16.msra.mxu0 %v1870
    %2059 = vmatprep.subr.bf16.mxu0 %v1874
    %2060 = vmatpush1.bf16.msra.mxu0 %v1873
    %2061 = vmatprep.subr.bf16.mxu0 %v1877
    %2062 = vmatpush1.bf16.msra.mxu0 %v1876
    %2063 = vmatprep.subr.bf16.mxu0 %v1880
    %2064 = vmatpush1.bf16.msra.mxu0 %v1879
    %2065 = vmatprep.subr.bf16.mxu0 %v1883
    %2066 = vmatpush1.bf16.msra.mxu0 %v1882
    %2067 = vmatprep.subr.bf16.mxu0 %v1886
    %2068 = vmatpush1.bf16.msra.mxu0 %v1885
    %2069 = vmatprep.subr.bf16.mxu0 %v1889
    %2070 = vmatpush1.bf16.msra.mxu0 %v1888
    %2071 = vmatprep.subr.bf16.mxu0 %v1892
    %2072 = vmatpush1.bf16.msra.mxu0 %v1891
    %2073 = vmatprep.subr.bf16.mxu0 %v1895
    %2074 = vmatpush1.bf16.msra.mxu0 %v1894
    %2075 = vmatprep.subr.bf16.mxu0 %v1898
    %2076 = vmatpush1.bf16.msra.mxu0 %v1897
    %2077 = vmatprep.subr.bf16.mxu0 %v1901
    %2078 = vmatpush1.bf16.msra.mxu0 %v1900
    %2079 = vmatprep.mubr.bf16.mxu0 %v1355
    %2080 = vmatmul.mubr.bf16.gmra.mrb[0].mxu0 %v1354
    %v2081 = vpop.f32.mrb[0].mxu0
    %v2082 = vadd.f32 %v1523, %v2081
    %v2083 = vpop.f32.mrb[0].mxu0
    %v2084 = vadd.f32 %v1527, %v2083
    %v2085 = vpop.f32.mrb[0].mxu0
    %v2086 = vadd.f32 %v1523, %v2085
    %v2087 = vpop.f32.mrb[0].mxu0
    %v2088 = vadd.f32 %v1527, %v2087
    %2089 = vmatprep.mubr.bf16.mxu0 %v1359
    %2090 = vmatmul.mubr.bf16.gmra.mrb[0].mxu0 %v1358
    %v2091 = vpop.f32.mrb[0].mxu0
    %v2092 = vadd.f32 %v1523, %v2091
    %v2093 = vpop.f32.mrb[0].mxu0
    %v2094 = vadd.f32 %v1527, %v2093
    %v2095 = vpop.f32.mrb[0].mxu0
    %v2096 = vadd.f32 %v1523, %v2095
    %v2097 = vpop.f32.mrb[0].mxu0
    %v2098 = vadd.f32 %v1527, %v2097
    %2099 = vmatprep.mubr.bf16.mxu0 %v1363
    %2100 = vmatmul.mubr.bf16.gmra.mrb[0].mxu0 %v1362
    %v2101 = vpop.f32.mrb[0].mxu0
    %v2102 = vadd.f32 %v1523, %v2101
    %v2103 = vpop.f32.mrb[0].mxu0
    %v2104 = vadd.f32 %v1527, %v2103
    %v2105 = vpop.f32.mrb[0].mxu0
    %v2106 = vadd.f32 %v1523, %v2105
    %v2107 = vpop.f32.mrb[0].mxu0
    %v2108 = vadd.f32 %v1527, %v2107
    %2109 = vmatprep.mubr.bf16.mxu0 %v1367
    %2110 = vmatmul.mubr.bf16.gmra.mrb[0].mxu0 %v1366
    %v2111 = vpop.f32.mrb[0].mxu0
    %v2112 = vadd.f32 %v1523, %v2111
    %v2113 = vpop.f32.mrb[0].mxu0
    %v2114 = vadd.f32 %v1527, %v2113
    %v2115 = vpop.f32.mrb[0].mxu0
    %v2116 = vadd.f32 %v1523, %v2115
    %v2117 = vpop.f32.mrb[0].mxu0
    %v2118 = vadd.f32 %v1527, %v2117
    %2119 = vmatprep.mubr.bf16.mxu0 %v1371
    %2120 = vmatmul.mubr.bf16.gmra.mrb[0].mxu0 %v1370
    %v2121 = vpop.f32.mrb[0].mxu0
    %v2122 = vadd.f32 %v1523, %v2121
    %v2123 = vpop.f32.mrb[0].mxu0
    %v2124 = vadd.f32 %v1527, %v2123
    %v2125 = vpop.f32.mrb[0].mxu0
    %v2126 = vadd.f32 %v1523, %v2125
    %v2127 = vpop.f32.mrb[0].mxu0
    %v2128 = vadd.f32 %v1527, %v2127
    %2129 = vmatprep.mubr.bf16.mxu0 %v1375
    %2130 = vmatmul.mubr.bf16.gmra.mrb[0].mxu0 %v1374
    %v2131 = vpop.f32.mrb[0].mxu0
    %v2132 = vadd.f32 %v1523, %v2131
    %v2133 = vpop.f32.mrb[0].mxu0
    %v2134 = vadd.f32 %v1527, %v2133
    %v2135 = vpop.f32.mrb[0].mxu0
    %v2136 = vadd.f32 %v1523, %v2135
    %v2137 = vpop.f32.mrb[0].mxu0
    %v2138 = vadd.f32 %v1527, %v2137
    %2139 = vmatprep.mubr.bf16.mxu0 %v1379
    %2140 = vmatmul.mubr.bf16.gmra.mrb[0].mxu0 %v1378
    %v2141 = vpop.f32.mrb[0].mxu0
    %v2142 = vadd.f32 %v1523, %v2141
    %v2143 = vpop.f32.mrb[0].mxu0
    %v2144 = vadd.f32 %v1527, %v2143
    %v2145 = vpop.f32.mrb[0].mxu0
    %v2146 = vadd.f32 %v1523, %v2145
    %v2147 = vpop.f32.mrb[0].mxu0
    %v2148 = vadd.f32 %v1527, %v2147
    %2149 = vmatprep.mubr.bf16.mxu0 %v1383
    %2150 = vmatmul.mubr.bf16.gmra.mrb[0].mxu0 %v1382
    %v2151 = vpop.f32.mrb[0].mxu0
    %v2152 = vadd.f32 %v1523, %v2151
    %v2153 = vpop.f32.mrb[0].mxu0
    %v2154 = vadd.f32 %v1527, %v2153
    %v2155 = vpop.f32.mrb[0].mxu0
    %v2156 = vadd.f32 %v1523, %v2155
    %v2157 = vpop.f32.mrb[0].mxu0
    %v2158 = vadd.f32 %v1527, %v2157
    %2159 = vmatprep.mubr.bf16.mxu0 %v1387
    %2160 = vmatmul.mubr.bf16.gmra.mrb[0].mxu0 %v1386
    %v2161 = vpop.f32.mrb[0].mxu0
    %v2162 = vadd.f32 %v1523, %v2161
    %v2163 = vpop.f32.mrb[0].mxu0
    %v2164 = vadd.f32 %v1527, %v2163
    %v2165 = vpop.f32.mrb[0].mxu0
    %v2166 = vadd.f32 %v1523, %v2165
    %v2167 = vpop.f32.mrb[0].mxu0
    %v2168 = vadd.f32 %v1527, %v2167
    %2169 = vdwg.mxu0
    %2170 = vmatprep.subr.bf16.mxu0 %v1904
    %2171 = vmatpush1.bf16.msra.mxu0 %v1903
    %2172 = vmatprep.subr.bf16.mxu0 %v1907
    %2173 = vmatpush1.bf16.msra.mxu0 %v1906
    %2174 = vmatprep.subr.bf16.mxu0 %v1910
    %2175 = vmatpush1.bf16.msra.mxu0 %v1909
    %2176 = vmatprep.subr.bf16.mxu0 %v1913
    %2177 = vmatpush1.bf16.msra.mxu0 %v1912
    %2178 = vmatprep.subr.bf16.mxu0 %v1916
    %2179 = vmatpush1.bf16.msra.mxu0 %v1915
    %2180 = vmatprep.subr.bf16.mxu0 %v1919
    %2181 = vmatpush1.bf16.msra.mxu0 %v1918
    %2182 = vmatprep.subr.bf16.mxu0 %v1922
    %2183 = vmatpush1.bf16.msra.mxu0 %v1921
    %2184 = vmatprep.subr.bf16.mxu0 %v1925
    %2185 = vmatpush1.bf16.msra.mxu0 %v1924
    %2186 = vmatprep.subr.bf16.mxu0 %v1928
    %2187 = vmatpush1.bf16.msra.mxu0 %v1927
    %2188 = vmatprep.subr.bf16.mxu0 %v1931
    %2189 = vmatpush1.bf16.msra.mxu0 %v1930
    %2190 = vmatprep.subr.bf16.mxu0 %v1934
    %2191 = vmatpush1.bf16.msra.mxu0 %v1933
    %2192 = vmatprep.subr.bf16.mxu0 %v1937
    %2193 = vmatpush1.bf16.msra.mxu0 %v1936
    %2194 = vmatprep.subr.bf16.mxu0 %v1940
    %2195 = vmatpush1.bf16.msra.mxu0 %v1939
    %2196 = vmatprep.subr.bf16.mxu0 %v1943
    %2197 = vmatpush1.bf16.msra.mxu0 %v1942
    %2198 = vmatprep.subr.bf16.mxu0 %v1946
    %2199 = vmatpush1.bf16.msra.mxu0 %v1945
    %2200 = vmatprep.subr.bf16.mxu0 %v1949
    %2201 = vmatpush1.bf16.msra.mxu0 %v1948
    %2202 = vmatprep.mubr.bf16.mxu0 %v1357
    %2203 = vmatmul.mubr.bf16.gmra.mrb[0].mxu0 %v1356
    %v2204 = vpop.f32.mrb[0].mxu0
    %v2205 = vadd.f32 %v2082, %v2204
    %v2206 = vpop.f32.mrb[0].mxu0
    %v2207 = vadd.f32 %v2084, %v2206
    %v2208 = vpop.f32.mrb[0].mxu0
    %v2209 = vadd.f32 %v2086, %v2208
    %v2210 = vpop.f32.mrb[0].mxu0
    %v2211 = vadd.f32 %v2088, %v2210
    %2212 = vmatprep.mubr.bf16.mxu0 %v1361
    %2213 = vmatmul.mubr.bf16.gmra.mrb[0].mxu0 %v1360
    %v2214 = vpop.f32.mrb[0].mxu0
    %v2215 = vadd.f32 %v2092, %v2214
    %v2216 = vpop.f32.mrb[0].mxu0
    %v2217 = vadd.f32 %v2094, %v2216
    %v2218 = vpop.f32.mrb[0].mxu0
    %v2219 = vadd.f32 %v2096, %v2218
    %v2220 = vpop.f32.mrb[0].mxu0
    %v2221 = vadd.f32 %v2098, %v2220
    %2222 = vmatprep.mubr.bf16.mxu0 %v1365
    %2223 = vmatmul.mubr.bf16.gmra.mrb[0].mxu0 %v1364
    %v2224 = vpop.f32.mrb[0].mxu0
    %v2225 = vadd.f32 %v2102, %v2224
    %v2226 = vpop.f32.mrb[0].mxu0
    %v2227 = vadd.f32 %v2104, %v2226
    %v2228 = vpop.f32.mrb[0].mxu0
    %v2229 = vadd.f32 %v2106, %v2228
    %v2230 = vpop.f32.mrb[0].mxu0
    %v2231 = vadd.f32 %v2108, %v2230
    %2232 = vmatprep.mubr.bf16.mxu0 %v1369
    %2233 = vmatmul.mubr.bf16.gmra.mrb[0].mxu0 %v1368
    %v2234 = vpop.f32.mrb[0].mxu0
    %v2235 = vadd.f32 %v2112, %v2234
    %v2236 = vpop.f32.mrb[0].mxu0
    %v2237 = vadd.f32 %v2114, %v2236
    %v2238 = vpop.f32.mrb[0].mxu0
    %v2239 = vadd.f32 %v2116, %v2238
    %v2240 = vpop.f32.mrb[0].mxu0
    %v2241 = vadd.f32 %v2118, %v2240
    %2242 = vmatprep.mubr.bf16.mxu0 %v1373
    %2243 = vmatmul.mubr.bf16.gmra.mrb[0].mxu0 %v1372
    %v2244 = vpop.f32.mrb[0].mxu0
    %v2245 = vadd.f32 %v2122, %v2244
    %v2246 = vpop.f32.mrb[0].mxu0
    %v2247 = vadd.f32 %v2124, %v2246
    %v2248 = vpop.f32.mrb[0].mxu0
    %v2249 = vadd.f32 %v2126, %v2248
    %v2250 = vpop.f32.mrb[0].mxu0
    %v2251 = vadd.f32 %v2128, %v2250
    %2252 = vmatprep.mubr.bf16.mxu0 %v1377
    %2253 = vmatmul.mubr.bf16.gmra.mrb[0].mxu0 %v1376
    %v2254 = vpop.f32.mrb[0].mxu0
    %v2255 = vadd.f32 %v2132, %v2254
    %v2256 = vpop.f32.mrb[0].mxu0
    %v2257 = vadd.f32 %v2134, %v2256
    %v2258 = vpop.f32.mrb[0].mxu0
    %v2259 = vadd.f32 %v2136, %v2258
    %v2260 = vpop.f32.mrb[0].mxu0
    %v2261 = vadd.f32 %v2138, %v2260
    %2262 = vmatprep.mubr.bf16.mxu0 %v1381
    %2263 = vmatmul.mubr.bf16.gmra.mrb[0].mxu0 %v1380
    %v2264 = vpop.f32.mrb[0].mxu0
    %v2265 = vadd.f32 %v2142, %v2264
    %v2266 = vpop.f32.mrb[0].mxu0
    %v2267 = vadd.f32 %v2144, %v2266
    %v2268 = vpop.f32.mrb[0].mxu0
    %v2269 = vadd.f32 %v2146, %v2268
    %v2270 = vpop.f32.mrb[0].mxu0
    %v2271 = vadd.f32 %v2148, %v2270
    %2272 = vmatprep.mubr.bf16.mxu0 %v1385
    %2273 = vmatmul.mubr.bf16.gmra.mrb[0].mxu0 %v1384
    %v2274 = vpop.f32.mrb[0].mxu0
    %v2275 = vadd.f32 %v2152, %v2274
    %v2276 = vpop.f32.mrb[0].mxu0
    %v2277 = vadd.f32 %v2154, %v2276
    %v2278 = vpop.f32.mrb[0].mxu0
    %v2279 = vadd.f32 %v2156, %v2278
    %v2280 = vpop.f32.mrb[0].mxu0
    %v2281 = vadd.f32 %v2158, %v2280
    %2282 = vmatprep.mubr.bf16.mxu0 %v1389
    %2283 = vmatmul.mubr.bf16.gmra.mrb[0].mxu0 %v1388
    %v2284 = vpop.f32.mrb[0].mxu0
    %v2285 = vadd.f32 %v2162, %v2284
    %v2286 = vpop.f32.mrb[0].mxu0
    %v2287 = vadd.f32 %v2164, %v2286
    %v2288 = vpop.f32.mrb[0].mxu0
    %v2289 = vadd.f32 %v2166, %v2288
    %v2290 = vpop.f32.mrb[0].mxu0
    %v2291 = vadd.f32 %v2168, %v2290
    %2292 = vdwg.mxu0
    %2293 = vmatprep.subr.bf16.mxu0 0
    %2294 = vmatpush1.bf16.msra.mxu0 %v1857
    %2295 = vmatprep.subr.bf16.mxu0 0
    %2296 = vmatpush1.bf16.msra.mxu0 %v1860
    %2297 = vmatprep.subr.bf16.mxu0 0
    %2298 = vmatpush1.bf16.msra.mxu0 %v1863
    %2299 = vmatprep.subr.bf16.mxu0 0
    %2300 = vmatpush1.bf16.msra.mxu0 %v1866
    %2301 = vmatprep.subr.bf16.mxu0 0
    %2302 = vmatpush1.bf16.msra.mxu0 %v1869
    %2303 = vmatprep.subr.bf16.mxu0 0
    %2304 = vmatpush1.bf16.msra.mxu0 %v1872
    %2305 = vmatprep.subr.bf16.mxu0 0
    %2306 = vmatpush1.bf16.msra.mxu0 %v1875
    %2307 = vmatprep.subr.bf16.mxu0 0
    %2308 = vmatpush1.bf16.msra.mxu0 %v1878
    %2309 = vmatprep.subr.bf16.mxu0 0
    %2310 = vmatpush1.bf16.msra.mxu0 %v1881
    %2311 = vmatprep.subr.bf16.mxu0 0
    %2312 = vmatpush1.bf16.msra.mxu0 %v1884
    %2313 = vmatprep.subr.bf16.mxu0 0
    %2314 = vmatpush1.bf16.msra.mxu0 %v1887
    %2315 = vmatprep.subr.bf16.mxu0 0
    %2316 = vmatpush1.bf16.msra.mxu0 %v1890
    %2317 = vmatprep.subr.bf16.mxu0 0
    %2318 = vmatpush1.bf16.msra.mxu0 %v1893
    %2319 = vmatprep.subr.bf16.mxu0 0
    %2320 = vmatpush1.bf16.msra.mxu0 %v1896
    %2321 = vmatprep.subr.bf16.mxu0 0
    %2322 = vmatpush1.bf16.msra.mxu0 %v1899
    %2323 = vmatprep.subr.bf16.mxu0 0
    %2324 = vmatpush1.bf16.msra.mxu0 %v1902
    %2325 = vmatprep.mubr.bf16.mxu0 %v1355
    %2326 = vmatmul.mubr.bf16.gmra.mrb[0].mxu0 %v1354
    %v2327 = vpop.f32.mrb[0].mxu0
    %v2328 = vadd.f32 %v1531, %v2327
    %v2329 = vpop.f32.mrb[0].mxu0
    %v2330 = vpop.f32.mrb[0].mxu0
    %v2331 = vadd.f32 %v1531, %v2330
    %v2332 = vpop.f32.mrb[0].mxu0
    %2333 = vmatprep.mubr.bf16.mxu0 %v1359
    %2334 = vmatmul.mubr.bf16.gmra.mrb[0].mxu0 %v1358
    %v2335 = vpop.f32.mrb[0].mxu0
    %v2336 = vadd.f32 %v1531, %v2335
    %v2337 = vpop.f32.mrb[0].mxu0
    %v2338 = vpop.f32.mrb[0].mxu0
    %v2339 = vadd.f32 %v1531, %v2338
    %v2340 = vpop.f32.mrb[0].mxu0
    %2341 = vmatprep.mubr.bf16.mxu0 %v1363
    %2342 = vmatmul.mubr.bf16.gmra.mrb[0].mxu0 %v1362
    %v2343 = vpop.f32.mrb[0].mxu0
    %v2344 = vadd.f32 %v1531, %v2343
    %v2345 = vpop.f32.mrb[0].mxu0
    %v2346 = vpop.f32.mrb[0].mxu0
    %v2347 = vadd.f32 %v1531, %v2346
    %v2348 = vpop.f32.mrb[0].mxu0
    %2349 = vmatprep.mubr.bf16.mxu0 %v1367
    %2350 = vmatmul.mubr.bf16.gmra.mrb[0].mxu0 %v1366
    %v2351 = vpop.f32.mrb[0].mxu0
    %v2352 = vadd.f32 %v1531, %v2351
    %v2353 = vpop.f32.mrb[0].mxu0
    %v2354 = vpop.f32.mrb[0].mxu0
    %v2355 = vadd.f32 %v1531, %v2354
    %v2356 = vpop.f32.mrb[0].mxu0
    %2357 = vmatprep.mubr.bf16.mxu0 %v1371
    %2358 = vmatmul.mubr.bf16.gmra.mrb[0].mxu0 %v1370
    %v2359 = vpop.f32.mrb[0].mxu0
    %v2360 = vadd.f32 %v1531, %v2359
    %v2361 = vpop.f32.mrb[0].mxu0
    %v2362 = vpop.f32.mrb[0].mxu0
    %v2363 = vadd.f32 %v1531, %v2362
    %v2364 = vpop.f32.mrb[0].mxu0
    %2365 = vmatprep.mubr.bf16.mxu0 %v1375
    %2366 = vmatmul.mubr.bf16.gmra.mrb[0].mxu0 %v1374
    %v2367 = vpop.f32.mrb[0].mxu0
    %v2368 = vadd.f32 %v1531, %v2367
    %v2369 = vpop.f32.mrb[0].mxu0
    %v2370 = vpop.f32.mrb[0].mxu0
    %v2371 = vadd.f32 %v1531, %v2370
    %v2372 = vpop.f32.mrb[0].mxu0
    %2373 = vmatprep.mubr.bf16.mxu0 %v1379
    %2374 = vmatmul.mubr.bf16.gmra.mrb[0].mxu0 %v1378
    %v2375 = vpop.f32.mrb[0].mxu0
    %v2376 = vadd.f32 %v1531, %v2375
    %v2377 = vpop.f32.mrb[0].mxu0
    %v2378 = vpop.f32.mrb[0].mxu0
    %v2379 = vadd.f32 %v1531, %v2378
    %v2380 = vpop.f32.mrb[0].mxu0
    %2381 = vmatprep.mubr.bf16.mxu0 %v1383
    %2382 = vmatmul.mubr.bf16.gmra.mrb[0].mxu0 %v1382
    %v2383 = vpop.f32.mrb[0].mxu0
    %v2384 = vadd.f32 %v1531, %v2383
    %v2385 = vpop.f32.mrb[0].mxu0
    %v2386 = vpop.f32.mrb[0].mxu0
    %v2387 = vadd.f32 %v1531, %v2386
    %v2388 = vpop.f32.mrb[0].mxu0
    %2389 = vmatprep.mubr.bf16.mxu0 %v1387
    %2390 = vmatmul.mubr.bf16.gmra.mrb[0].mxu0 %v1386
    %v2391 = vpop.f32.mrb[0].mxu0
    %v2392 = vadd.f32 %v1531, %v2391
    %v2393 = vpop.f32.mrb[0].mxu0
    %v2394 = vpop.f32.mrb[0].mxu0
    %v2395 = vadd.f32 %v1531, %v2394
    %v2396 = vpop.f32.mrb[0].mxu0
    %2397 = vdwg.mxu0
    %2398 = vmatprep.subr.bf16.mxu0 0
    %2399 = vmatpush1.bf16.msra.mxu0 %v1905
    %2400 = vmatprep.subr.bf16.mxu0 0
    %2401 = vmatpush1.bf16.msra.mxu0 %v1908
    %2402 = vmatprep.subr.bf16.mxu0 0
    %2403 = vmatpush1.bf16.msra.mxu0 %v1911
    %2404 = vmatprep.subr.bf16.mxu0 0
    %2405 = vmatpush1.bf16.msra.mxu0 %v1914
    %2406 = vmatprep.subr.bf16.mxu0 0
    %2407 = vmatpush1.bf16.msra.mxu0 %v1917
    %2408 = vmatprep.subr.bf16.mxu0 0
    %2409 = vmatpush1.bf16.msra.mxu0 %v1920
    %2410 = vmatprep.subr.bf16.mxu0 0
    %2411 = vmatpush1.bf16.msra.mxu0 %v1923
    %2412 = vmatprep.subr.bf16.mxu0 0
    %2413 = vmatpush1.bf16.msra.mxu0 %v1926
    %2414 = vmatprep.subr.bf16.mxu0 0
    %2415 = vmatpush1.bf16.msra.mxu0 %v1929
    %2416 = vmatprep.subr.bf16.mxu0 0
    %2417 = vmatpush1.bf16.msra.mxu0 %v1932
    %2418 = vmatprep.subr.bf16.mxu0 0
    %2419 = vmatpush1.bf16.msra.mxu0 %v1935
    %2420 = vmatprep.subr.bf16.mxu0 0
    %2421 = vmatpush1.bf16.msra.mxu0 %v1938
    %2422 = vmatprep.subr.bf16.mxu0 0
    %2423 = vmatpush1.bf16.msra.mxu0 %v1941
    %2424 = vmatprep.subr.bf16.mxu0 0
    %2425 = vmatpush1.bf16.msra.mxu0 %v1944
    %2426 = vmatprep.subr.bf16.mxu0 0
    %2427 = vmatpush1.bf16.msra.mxu0 %v1947
    %2428 = vmatprep.subr.bf16.mxu0 0
    %2429 = vmatpush1.bf16.msra.mxu0 %v1950
    %2430 = vmatprep.mubr.bf16.mxu0 %v1357
    %2431 = vmatmul.mubr.bf16.gmra.mrb[0].mxu0 %v1356
    %v2432 = vpop.f32.mrb[0].mxu0
    %v2433 = vadd.f32 %v2328, %v2432
    %v2434 = vpop.f32.mrb[0].mxu0
    %v2435 = vpop.f32.mrb[0].mxu0
    %v2436 = vadd.f32 %v2331, %v2435
    %v2437 = vpop.f32.mrb[0].mxu0
    %2438 = vmatprep.mubr.bf16.mxu0 %v1361
    %2439 = vmatmul.mubr.bf16.gmra.mrb[0].mxu0 %v1360
    %v2440 = vpop.f32.mrb[0].mxu0
    %v2441 = vadd.f32 %v2336, %v2440
    %v2442 = vpop.f32.mrb[0].mxu0
    %v2443 = vpop.f32.mrb[0].mxu0
    %v2444 = vadd.f32 %v2339, %v2443
    %v2445 = vpop.f32.mrb[0].mxu0
    %2446 = vmatprep.mubr.bf16.mxu0 %v1365
    %2447 = vmatmul.mubr.bf16.gmra.mrb[0].mxu0 %v1364
    %v2448 = vpop.f32.mrb[0].mxu0
    %v2449 = vadd.f32 %v2344, %v2448
    %v2450 = vpop.f32.mrb[0].mxu0
    %v2451 = vpop.f32.mrb[0].mxu0
    %v2452 = vadd.f32 %v2347, %v2451
    %v2453 = vpop.f32.mrb[0].mxu0
    %2454 = vmatprep.mubr.bf16.mxu0 %v1369
    %2455 = vmatmul.mubr.bf16.gmra.mrb[0].mxu0 %v1368
    %v2456 = vpop.f32.mrb[0].mxu0
    %v2457 = vadd.f32 %v2352, %v2456
    %v2458 = vpop.f32.mrb[0].mxu0
    %v2459 = vpop.f32.mrb[0].mxu0
    %v2460 = vadd.f32 %v2355, %v2459
    %v2461 = vpop.f32.mrb[0].mxu0
    %2462 = vmatprep.mubr.bf16.mxu0 %v1373
    %2463 = vmatmul.mubr.bf16.gmra.mrb[0].mxu0 %v1372
    %v2464 = vpop.f32.mrb[0].mxu0
    %v2465 = vadd.f32 %v2360, %v2464
    %v2466 = vpop.f32.mrb[0].mxu0
    %v2467 = vpop.f32.mrb[0].mxu0
    %v2468 = vadd.f32 %v2363, %v2467
    %v2469 = vpop.f32.mrb[0].mxu0
    %2470 = vmatprep.mubr.bf16.mxu0 %v1377
    %2471 = vmatmul.mubr.bf16.gmra.mrb[0].mxu0 %v1376
    %v2472 = vpop.f32.mrb[0].mxu0
    %v2473 = vadd.f32 %v2368, %v2472
    %v2474 = vpop.f32.mrb[0].mxu0
    %v2475 = vpop.f32.mrb[0].mxu0
    %v2476 = vadd.f32 %v2371, %v2475
    %v2477 = vpop.f32.mrb[0].mxu0
    %2478 = vmatprep.mubr.bf16.mxu0 %v1381
    %2479 = vmatmul.mubr.bf16.gmra.mrb[0].mxu0 %v1380
    %v2480 = vpop.f32.mrb[0].mxu0
    %v2481 = vadd.f32 %v2376, %v2480
    %v2482 = vpop.f32.mrb[0].mxu0
    %v2483 = vpop.f32.mrb[0].mxu0
    %v2484 = vadd.f32 %v2379, %v2483
    %v2485 = vpop.f32.mrb[0].mxu0
    %2486 = vmatprep.mubr.bf16.mxu0 %v1385
    %2487 = vmatmul.mubr.bf16.gmra.mrb[0].mxu0 %v1384
    %v2488 = vpop.f32.mrb[0].mxu0
    %v2489 = vadd.f32 %v2384, %v2488
    %v2490 = vpop.f32.mrb[0].mxu0
    %v2491 = vpop.f32.mrb[0].mxu0
    %v2492 = vadd.f32 %v2387, %v2491
    %v2493 = vpop.f32.mrb[0].mxu0
    %2494 = vmatprep.mubr.bf16.mxu0 %v1389
    %2495 = vmatmul.mubr.bf16.gmra.mrb[0].mxu0 %v1388
    %v2496 = vpop.f32.mrb[0].mxu0
    %v2497 = vadd.f32 %v2392, %v2496
    %v2498 = vpop.f32.mrb[0].mxu0
    %v2499 = vpop.f32.mrb[0].mxu0
    %v2500 = vadd.f32 %v2395, %v2499
    %v2501 = vpop.f32.mrb[0].mxu0
    %2502 = vdwg.mxu0
    %v2503 = vmax.f32 %v2205, 0.0
    %v2504 = vmax.f32 %v2207, 0.0
    %v2505 = vmax.f32 %v2433, 0.0
    %v2506 = vmax.f32 %v2209, 0.0
    %v2507 = vmax.f32 %v2211, 0.0
    %v2508 = vmax.f32 %v2436, 0.0
    %v2509 = vmax.f32 %v2215, 0.0
    %v2510 = vmax.f32 %v2217, 0.0
    %v2511 = vmax.f32 %v2441, 0.0
    %v2512 = vmax.f32 %v2219, 0.0
    %v2513 = vmax.f32 %v2221, 0.0
    %v2514 = vmax.f32 %v2444, 0.0
    %v2515 = vmax.f32 %v2225, 0.0
    %v2516 = vmax.f32 %v2227, 0.0
    %v2517 = vmax.f32 %v2449, 0.0
    %v2518 = vmax.f32 %v2229, 0.0
    %v2519 = vmax.f32 %v2231, 0.0
    %v2520 = vmax.f32 %v2452, 0.0
    %v2521 = vmax.f32 %v2235, 0.0
    %v2522 = vmax.f32 %v2237, 0.0
    %v2523 = vmax.f32 %v2457, 0.0
    %v2524 = vmax.f32 %v2239, 0.0
    %v2525 = vmax.f32 %v2241, 0.0
    %v2526 = vmax.f32 %v2460, 0.0
    %v2527 = vmax.f32 %v2245, 0.0
    %v2528 = vmax.f32 %v2247, 0.0
    %v2529 = vmax.f32 %v2465, 0.0
    %v2530 = vmax.f32 %v2249, 0.0
    %v2531 = vmax.f32 %v2251, 0.0
    %v2532 = vmax.f32 %v2468, 0.0
    %v2533 = vmax.f32 %v2255, 0.0
    %v2534 = vmax.f32 %v2257, 0.0
    %v2535 = vmax.f32 %v2473, 0.0
    %v2536 = vmax.f32 %v2259, 0.0
    %v2537 = vmax.f32 %v2261, 0.0
    %v2538 = vmax.f32 %v2476, 0.0
    %v2539 = vmax.f32 %v2265, 0.0
    %v2540 = vmax.f32 %v2267, 0.0
    %v2541 = vmax.f32 %v2481, 0.0
    %v2542 = vmax.f32 %v2269, 0.0
    %v2543 = vmax.f32 %v2271, 0.0
    %v2544 = vmax.f32 %v2484, 0.0
    %v2545 = vmax.f32 %v2275, 0.0
    %v2546 = vmax.f32 %v2277, 0.0
    %v2547 = vmax.f32 %v2489, 0.0
    %v2548 = vmax.f32 %v2279, 0.0
    %v2549 = vmax.f32 %v2281, 0.0
    %v2550 = vmax.f32 %v2492, 0.0
    %v2551 = vmax.f32 %v2285, 0.0
    %v2552 = vmax.f32 %v2287, 0.0
    %v2553 = vmax.f32 %v2497, 0.0
    %v2554 = vmax.f32 %v2289, 0.0
    %v2555 = vmax.f32 %v2291, 0.0
    %v2556 = vmax.f32 %v2500, 0.0
    %2557 = vst [vmem:[#allocation11] sm:$0xff] %v2503
    %2558 = vst [vmem:[#allocation11 + $0x8] sm:$0xff] %v2504
    %2559 = vst [vmem:[#allocation11 + $0x10] sm:$0xff] %v2505
    %2560 = vst [vmem:[#allocation11 + $0x18] sm:$0xff] %v2506
    %2561 = vst [vmem:[#allocation11 + $0x20] sm:$0xff] %v2507
    %2562 = vst [vmem:[#allocation11 + $0x28] sm:$0xff] %v2508
    %2563 = vst [vmem:[#allocation11 + $0x30] sm:$0xff] %v2509
    %2564 = vst [vmem:[#allocation11 + $0x38] sm:$0xff] %v2510
    %2565 = vst [vmem:[#allocation11 + $0x40] sm:$0xff] %v2511
    %2566 = vst [vmem:[#allocation11 + $0x48] sm:$0xff] %v2512
    %2567 = vst [vmem:[#allocation11 + $0x50] sm:$0xff] %v2513
    %2568 = vst [vmem:[#allocation11 + $0x58] sm:$0xff] %v2514
    %2569 = vst [vmem:[#allocation11 + $0x60] sm:$0xff] %v2515
    %2570 = vst [vmem:[#allocation11 + $0x68] sm:$0xff] %v2516
    %2571 = vst [vmem:[#allocation11 + $0x70] sm:$0xff] %v2517
    %2572 = vst [vmem:[#allocation11 + $0x78] sm:$0xff] %v2518
    %2573 = vst [vmem:[#allocation11 + $0x80] sm:$0xff] %v2519
    %2574 = vst [vmem:[#allocation11 + $0x88] sm:$0xff] %v2520
    %2575 = vst [vmem:[#allocation11 + $0x90] sm:$0xff] %v2521
    %2576 = vst [vmem:[#allocation11 + $0x98] sm:$0xff] %v2522
    %2577 = vst [vmem:[#allocation11 + $0xa0] sm:$0xff] %v2523
    %2578 = vst [vmem:[#allocation11 + $0xa8] sm:$0xff] %v2524
    %2579 = vst [vmem:[#allocation11 + $0xb0] sm:$0xff] %v2525
    %2580 = vst [vmem:[#allocation11 + $0xb8] sm:$0xff] %v2526
    %2581 = vst [vmem:[#allocation11 + $0xc0] sm:$0xff] %v2527
    %2582 = vst [vmem:[#allocation11 + $0xc8] sm:$0xff] %v2528
    %2583 = vst [vmem:[#allocation11 + $0xd0] sm:$0xff] %v2529
    %2584 = vst [vmem:[#allocation11 + $0xd8] sm:$0xff] %v2530
    %2585 = vst [vmem:[#allocation11 + $0xe0] sm:$0xff] %v2531
    %2586 = vst [vmem:[#allocation11 + $0xe8] sm:$0xff] %v2532
    %2587 = vst [vmem:[#allocation11 + $0xf0] sm:$0xff] %v2533
    %2588 = vst [vmem:[#allocation11 + $0xf8] sm:$0xff] %v2534
    %2589 = vst [vmem:[#allocation11 + $0x100] sm:$0xff] %v2535
    %2590 = vst [vmem:[#allocation11 + $0x108] sm:$0xff] %v2536
    %2591 = vst [vmem:[#allocation11 + $0x110] sm:$0xff] %v2537
    %2592 = vst [vmem:[#allocation11 + $0x118] sm:$0xff] %v2538
    %2593 = vst [vmem:[#allocation11 + $0x120] sm:$0xff] %v2539
    %2594 = vst [vmem:[#allocation11 + $0x128] sm:$0xff] %v2540
    %2595 = vst [vmem:[#allocation11 + $0x130] sm:$0xff] %v2541
    %2596 = vst [vmem:[#allocation11 + $0x138] sm:$0xff] %v2542
    %2597 = vst [vmem:[#allocation11 + $0x140] sm:$0xff] %v2543
    %2598 = vst [vmem:[#allocation11 + $0x148] sm:$0xff] %v2544
    %2599 = vst [vmem:[#allocation11 + $0x150] sm:$0xff] %v2545
    %2600 = vst [vmem:[#allocation11 + $0x158] sm:$0xff] %v2546
    %2601 = vst [vmem:[#allocation11 + $0x160] sm:$0xff] %v2547
    %2602 = vst [vmem:[#allocation11 + $0x168] sm:$0xff] %v2548
    %2603 = vst [vmem:[#allocation11 + $0x170] sm:$0xff] %v2549
    %2604 = vst [vmem:[#allocation11 + $0x178] sm:$0xff] %v2550
    %2605 = vst [vmem:[#allocation11 + $0x180] sm:$0xff] %v2551
    %2606 = vst [vmem:[#allocation11 + $0x188] sm:$0xff] %v2552
    %2607 = vst [vmem:[#allocation11 + $0x190] sm:$0xff] %v2553
    %2608 = vst [vmem:[#allocation11 + $0x198] sm:$0xff] %v2554
    %2609 = vst [vmem:[#allocation11 + $0x1a0] sm:$0xff] %v2555
    %2610 = vst [vmem:[#allocation11 + $0x1a8] sm:$0xff] %v2556
    // Predicated region
    $region50: #{tpu_custom_call.1} parent=1 // pred_check
      _
    $region51: #{tpu_custom_call.1} parent=1 // pred_check_branch
      %2612 = sbr.rel (0) target = $region53
    $region52: #{tpu_custom_call.1} parent=1 // pred_region
      %s2614 = ssub.s32 6912, 6912
      %2615 = vsyncadd [#allocation4], %s2614
      %s2616 = sshll.u32 [#allocation11], 4
      %s2617 = int_to_ptr.vmem [resolvable:$true] %s2616
      %2622 = dma.vmem_to_hbm [thread:$0]  %s2617, 6912, %s7, [#allocation4], 384, 384, 24
    $region53: #{tpu_custom_call.1} parent=1 // pred_fallthru
      _
    // Predicated region
    $region54: #{tpu_custom_call.1} parent=1 // pred_check
      _
    $region55: #{tpu_custom_call.1} parent=1 // pred_check_branch
      %2624 = sbr.rel (0) target = $region57
    $region56: #{tpu_custom_call.1} parent=1 // pred_region
      %2625 = dma.done [#allocation4], 6912
    $region57: #{tpu_custom_call.1} parent=1 // pred_fallthru
      _
    %2626 = vsyncpa [#allocation3], 1
    %2627 = vsyncpa [#allocation6], 1
    %2628 = vsyncpa [#allocation9], 1
    %2629 = vsyncpa [#allocation4], 1

</llo_original>
